<compile_context>
chip_gen: v5e
topology: v5e:2x2
jax: 0.10.0
libtpu: 0.0.40
codegen_flags: <defaults>
</compile_context>

<pallas_src>
import jax
import jax.numpy as jnp
from jax.experimental import pallas as pl
from jax.experimental.pallas import tpu as pltpu

D_IN = 256
D_H0, D_H0_PAD = 1000, 1024
D_H1, D_H1_PAD = 200, 256
D_OUT = 1


def _round_up(n, m):
    return ((n + m - 1) // m) * m


def _prior_disc_kernel(x_ref, w0_ref, b0_ref, w1_ref, b1_ref, w2_ref, b2_ref, o_ref):
    cdt = w0_ref.dtype  # matmul operand dtype (bf16 by default, f32 if requested)

    # Layer 0: (tile, 256) @ (256, 1024) -> f32 accum; bias + ReLU in f32.
    h = jnp.dot(x_ref[...], w0_ref[...], preferred_element_type=jnp.float32)
    h = jnp.maximum(h + b0_ref[...], 0.0)

    # Layer 1: (tile, 1024) @ (1024, 256) -> f32 accum; bias + ReLU in f32.
    h = jnp.dot(h.astype(cdt), w1_ref[...], preferred_element_type=jnp.float32)
    h = jnp.maximum(h + b1_ref[...], 0.0)

    # Layer 2 (out_features == 1): VPU multiply + lane reduction instead of a
    # 1-column MXU matmul. w2 is a (1, 256) f32 row, b2 is (1, 1).
    logit = jnp.sum(h * w2_ref[...], axis=-1, keepdims=True) + b2_ref[...]
    out = jnp.maximum(jax.nn.sigmoid(logit), 9e-6)
    o_ref[...] = out.astype(o_ref.dtype)


def prior_discriminator(x, params, *, tb=256, matmul_dtype=jnp.bfloat16):
    """x: (B, 256) float32.

    params: dict with weights stored as (in_features, out_features) — i.e. the
    transpose of PyTorch's nn.Linear .weight — and biases as (1, out_features):
      w0 (256,1000) b0 (1,1000); w1 (1000,200) b1 (1,200); w2 (200,1) b2 (1,1).
    """
    B, d_in = x.shape
    assert d_in == D_IN

    # ---- choose batch tile: multiple of 8, capped at tb; prefer >= 2 grid steps.
    tile = min(tb, _round_up(B, 8))
    if _round_up(B, tile) // tile < 2 and tile >= 16:
        tile = _round_up(tile // 2, 8)  # split so both v7x TensorCores get work
    B_pad = _round_up(B, tile)
    grid = (B_pad // tile,)

    # ---- prepare weights once in the wrapper: pad ragged hidden dims to lane
    #      multiples and cast the two big matmul operands to matmul_dtype.
    w0 = jnp.pad(params["w0"], ((0, 0), (0, D_H0_PAD - D_H0))).astype(matmul_dtype)
    b0 = jnp.pad(params["b0"], ((0, 0), (0, D_H0_PAD - D_H0))).astype(jnp.float32)
    w1 = jnp.pad(params["w1"], ((0, D_H0_PAD - D_H0), (0, D_H1_PAD - D_H1))).astype(matmul_dtype)
    b1 = jnp.pad(params["b1"], ((0, 0), (0, D_H1_PAD - D_H1))).astype(jnp.float32)
    w2 = jnp.pad(params["w2"].reshape(1, D_H1), ((0, 0), (0, D_H1_PAD - D_H1))).astype(jnp.float32)
    b2 = params["b2"].reshape(1, 1).astype(jnp.float32)

    x_p = x.astype(matmul_dtype)
    if B_pad != B:
        x_p = jnp.pad(x_p, ((0, B_pad - B), (0, 0)))

    full = lambda arr: pl.BlockSpec(arr.shape, lambda i: (0, 0))

    out = pl.pallas_call(
        _prior_disc_kernel,
        out_shape=jax.ShapeDtypeStruct((B_pad, D_OUT), jnp.float32),
        grid_spec=pltpu.PrefetchScalarGridSpec(
            num_scalar_prefetch=0,
            grid=grid,
            in_specs=[
                pl.BlockSpec((tile, D_IN), lambda i: (i, 0)),  # x batch tile
                full(w0), full(b0),
                full(w1), full(b1),
                full(w2), full(b2),
            ],
            out_specs=pl.BlockSpec((tile, D_OUT), lambda i: (i, 0)),
        ),
        compiler_params=pltpu.CompilerParams(
            dimension_semantics=("parallel",),
        ),
    )(x_p, w0, b0, w1, b1, w2, b2)

    return out[:B]


def init_params(key):
    """Deterministic init matching PyTorch nn.Linear default (U(-1/sqrt(fan_in), +))."""
    ks = jax.random.split(key, 6)

    def linear(kw, kb, fan_in, fan_out):
        bound = 1.0 / jnp.sqrt(fan_in)
        w = jax.random.uniform(kw, (fan_in, fan_out), jnp.float32, -bound, bound)
        b = jax.random.uniform(kb, (1, fan_out), jnp.float32, -bound, bound)
        return w, b

    w0, b0 = linear(ks[0], ks[1], D_IN, D_H0)
    w1, b1 = linear(ks[2], ks[3], D_H0, D_H1)
    w2, b2 = linear(ks[4], ks[5], D_H1, D_OUT)
    return dict(w0=w0, b0=b0, w1=w1, b1=b1, w2=w2, b2=b2)


def reference(x, p):
    h = jnp.maximum(x @ p["w0"] + p["b0"], 0.0)
    h = jnp.maximum(h @ p["w1"] + p["b1"], 0.0)
    h = jax.nn.sigmoid(h @ p["w2"] + p["b2"])
    return jnp.maximum(h, 9e-6)


if __name__ == "__main__":
    key = jax.random.PRNGKey(0)
    k_x, k_p = jax.random.split(key)
    B = 16
    x = jax.random.normal(k_x, (B, D_IN), jnp.float32)
    params = init_params(k_p)

    ref = reference(x, params)

    # f32 matmul path: tight numerical check.
    out_f32 = jax.block_until_ready(
        prior_discriminator(x, params, matmul_dtype=jnp.float32))
    assert out_f32.shape == (B, D_OUT)
    assert jnp.allclose(out_f32, ref, atol=1e-4, rtol=1e-4), float(jnp.max(jnp.abs(out_f32 - ref)))

    # Default bf16-matmul path (v6e/v7x MXU-native): looser check; outputs are in [9e-6, 1].
    out_bf16 = jax.block_until_ready(prior_discriminator(x, params))
    assert out_bf16.shape == (B, D_OUT)
    assert jnp.allclose(out_bf16, ref, atol=5e-2, rtol=5e-2), float(jnp.max(jnp.abs(out_bf16 - ref)))

    print("KERNEL_OK")
</pallas_src>

<mosaic_0001>
module attributes {stable_mosaic.version = 11 : i64} {
  func.func @_prior_disc_kernel(%arg0: i32, %arg1: memref<8x256xf32, #tpu.memory_space<vmem>>, %arg2: memref<256x1024xf32, #tpu.memory_space<vmem>>, %arg3: memref<1x1024xf32, #tpu.memory_space<vmem>>, %arg4: memref<1024x256xf32, #tpu.memory_space<vmem>>, %arg5: memref<1x256xf32, #tpu.memory_space<vmem>>, %arg6: memref<1x256xf32, #tpu.memory_space<vmem>>, %arg7: memref<1x1xf32, #tpu.memory_space<vmem>>, %arg8: memref<8x1xf32, #tpu.memory_space<vmem>>) attributes {dimension_semantics = [#tpu.dimension_semantics<parallel>], iteration_bounds = array<i64: 2>, scalar_prefetch = 0 : i64, scratch_operands = 0 : i64, tpu.core_type = #tpu.core_type<tc>, window_params = [{transform_indices = @transform_0, window_bounds = array<i64: 8, 256>}, {pipeline_mode = #tpu.pipeline_mode<synchronous>, transform_indices = @transform_1, window_bounds = array<i64: 256, 1024>}, {pipeline_mode = #tpu.pipeline_mode<synchronous>, transform_indices = @transform_2, window_bounds = array<i64: 1, 1024>}, {pipeline_mode = #tpu.pipeline_mode<synchronous>, transform_indices = @transform_3, window_bounds = array<i64: 1024, 256>}, {pipeline_mode = #tpu.pipeline_mode<synchronous>, transform_indices = @transform_4, window_bounds = array<i64: 1, 256>}, {pipeline_mode = #tpu.pipeline_mode<synchronous>, transform_indices = @transform_5, window_bounds = array<i64: 1, 256>}, {pipeline_mode = #tpu.pipeline_mode<synchronous>, transform_indices = @transform_6, window_bounds = array<i64: 1, 1>}, {transform_indices = @transform_7, window_bounds = array<i64: 8, 1>}]} {
    %c0 = arith.constant 0 : index
    %c0_0 = arith.constant 0 : index
    %0 = vector.load %arg1[%c0, %c0_0] : memref<8x256xf32, #tpu.memory_space<vmem>>, vector<8x256xf32>
    %c0_1 = arith.constant 0 : index
    %c0_2 = arith.constant 0 : index
    %1 = vector.load %arg2[%c0_1, %c0_2] : memref<256x1024xf32, #tpu.memory_space<vmem>>, vector<256x1024xf32>
    %cst = arith.constant dense<0.000000e+00> : vector<8x1024xf32>
    %2 = tpu.matmul %0, %1, %cst {dimension_numbers = #tpu.dot_dimension_numbers<[1], [0], [0], [1], [0, 0, 1, 1], [], []>} : vector<8x256xf32>, vector<256x1024xf32>, vector<8x1024xf32> -> vector<8x1024xf32>
    %c0_3 = arith.constant 0 : index
    %c0_4 = arith.constant 0 : index
    %3 = vector.load %arg3[%c0_3, %c0_4] : memref<1x1024xf32, #tpu.memory_space<vmem>>, vector<1x1024xf32>
    %4 = vector.broadcast %3 : vector<1x1024xf32> to vector<8x1024xf32>
    %5 = arith.addf %2, %4 : vector<8x1024xf32>
    %cst_5 = arith.constant 0.000000e+00 : f32
    %6 = vector.broadcast %cst_5 : f32 to vector<8x1024xf32>
    %7 = arith.maximumf %5, %6 : vector<8x1024xf32>
    %c0_6 = arith.constant 0 : index
    %c0_7 = arith.constant 0 : index
    %8 = vector.load %arg4[%c0_6, %c0_7] : memref<1024x256xf32, #tpu.memory_space<vmem>>, vector<1024x256xf32>
    %cst_8 = arith.constant dense<0.000000e+00> : vector<8x256xf32>
    %9 = tpu.matmul %7, %8, %cst_8 {dimension_numbers = #tpu.dot_dimension_numbers<[1], [0], [0], [1], [0, 0, 1, 1], [], []>} : vector<8x1024xf32>, vector<1024x256xf32>, vector<8x256xf32> -> vector<8x256xf32>
    %c0_9 = arith.constant 0 : index
    %c0_10 = arith.constant 0 : index
    %10 = vector.load %arg5[%c0_9, %c0_10] : memref<1x256xf32, #tpu.memory_space<vmem>>, vector<1x256xf32>
    %11 = vector.broadcast %10 : vector<1x256xf32> to vector<8x256xf32>
    %12 = arith.addf %9, %11 : vector<8x256xf32>
    %cst_11 = arith.constant 0.000000e+00 : f32
    %13 = vector.broadcast %cst_11 : f32 to vector<8x256xf32>
    %14 = arith.maximumf %12, %13 : vector<8x256xf32>
    %c0_12 = arith.constant 0 : index
    %c0_13 = arith.constant 0 : index
    %15 = vector.load %arg6[%c0_12, %c0_13] : memref<1x256xf32, #tpu.memory_space<vmem>>, vector<1x256xf32>
    %16 = vector.broadcast %15 : vector<1x256xf32> to vector<8x256xf32>
    %17 = arith.mulf %14, %16 : vector<8x256xf32>
    %cst_14 = arith.constant dense<0.000000e+00> : vector<8xf32>
    %18 = vector.multi_reduction <add>, %17, %cst_14 [1] : vector<8x256xf32> to vector<8xf32>
    %19 = vector.shape_cast %18 : vector<8xf32> to vector<8x1xf32>
    %c0_15 = arith.constant 0 : index
    %c0_16 = arith.constant 0 : index
    %20 = vector.load %arg7[%c0_15, %c0_16] : memref<1x1xf32, #tpu.memory_space<vmem>>, vector<1x1xf32>
    %21 = vector.broadcast %20 : vector<1x1xf32> to vector<8x1xf32>
    %22 = arith.addf %19, %21 : vector<8x1xf32>
    %23 = arith.negf %22 : vector<8x1xf32>
    %24 = math.exp %23 : vector<8x1xf32>
    %cst_17 = arith.constant 1.000000e+00 : f32
    %25 = vector.broadcast %cst_17 : f32 to vector<8x1xf32>
    %26 = arith.addf %25, %24 : vector<8x1xf32>
    %27 = arith.divf %25, %26 : vector<8x1xf32>
    %cst_18 = arith.constant 9.000000e-06 : f32
    %28 = vector.broadcast %cst_18 : f32 to vector<8x1xf32>
    %29 = arith.maximumf %27, %28 : vector<8x1xf32>
    %c0_19 = arith.constant 0 : index
    %c0_20 = arith.constant 0 : index
    %30 = vector.load %arg8[%c0_19, %c0_20] : memref<8x1xf32, #tpu.memory_space<vmem>>, vector<8x1xf32>
    tpu.vector_store %arg8[%c0_19, %c0_20], %29 {strides = array<i32>} : memref<8x1xf32, #tpu.memory_space<vmem>>, vector<8x1xf32>,
    return
  }
  func.func @transform_0(%arg0: i32) -> (i32, i32) {
    %c0_i32 = arith.constant 0 : i32
    %c0_i32_0 = arith.constant 0 : i32
    return %arg0, %c0_i32 : i32, i32
  }
  func.func @transform_1(%arg0: i32) -> (i32, i32) {
    %c0_i32 = arith.constant 0 : i32
    %c0_i32_0 = arith.constant 0 : i32
    %c0_i32_1 = arith.constant 0 : i32
    return %c0_i32, %c0_i32_0 : i32, i32
  }
  func.func @transform_2(%arg0: i32) -> (i32, i32) {
    %c0_i32 = arith.constant 0 : i32
    %c0_i32_0 = arith.constant 0 : i32
    %c0_i32_1 = arith.constant 0 : i32
    return %c0_i32, %c0_i32_0 : i32, i32
  }
  func.func @transform_3(%arg0: i32) -> (i32, i32) {
    %c0_i32 = arith.constant 0 : i32
    %c0_i32_0 = arith.constant 0 : i32
    %c0_i32_1 = arith.constant 0 : i32
    return %c0_i32, %c0_i32_0 : i32, i32
  }
  func.func @transform_4(%arg0: i32) -> (i32, i32) {
    %c0_i32 = arith.constant 0 : i32
    %c0_i32_0 = arith.constant 0 : i32
    %c0_i32_1 = arith.constant 0 : i32
    return %c0_i32, %c0_i32_0 : i32, i32
  }
  func.func @transform_5(%arg0: i32) -> (i32, i32) {
    %c0_i32 = arith.constant 0 : i32
    %c0_i32_0 = arith.constant 0 : i32
    %c0_i32_1 = arith.constant 0 : i32
    return %c0_i32, %c0_i32_0 : i32, i32
  }
  func.func @transform_6(%arg0: i32) -> (i32, i32) {
    %c0_i32 = arith.constant 0 : i32
    %c0_i32_0 = arith.constant 0 : i32
    %c0_i32_1 = arith.constant 0 : i32
    return %c0_i32, %c0_i32_0 : i32, i32
  }
  func.func @transform_7(%arg0: i32) -> (i32, i32) {
    %c0_i32 = arith.constant 0 : i32
    %c0_i32_0 = arith.constant 0 : i32
    return %arg0, %c0_i32 : i32, i32
  }
}

</mosaic_0001>

<llo_original>
// kernel: tpu_custom_call.1
$region0: #{tpu_custom_call.1}
  #allocation0 [shape = 'u32[]', space=smem, size = 0x4, offset = 0x4, fixed_abs, tag = 'smem constant byte address 0x4 - core index']
  #allocation1 [shape = 'u32[72,128]{1,0:T(1,128)}', space=vmem, size = 0x9000, scoped, tag = 'internal scratch']
  #allocation2 [shape = 'f32[1,1]{1,0:T(1,128)S(1)}', space=vmem, size = 0x200, scoped, tag = 'scoped memory for tpu_custom_call.1']
  %s0 = inlined_call_operand.hbm [shape: f32[16,256], index: 0, kind: input, shape index: {}]
  %s1 = inlined_call_operand.hbm [shape: f32[256,1024], index: 1, kind: input, shape index: {}]
  %s2 = inlined_call_operand.hbm [shape: f32[1,1024], index: 2, kind: input, shape index: {}]
  %s3 = inlined_call_operand.hbm [shape: f32[1024,256], index: 3, kind: input, shape index: {}]
  %s4 = inlined_call_operand.vmem [shape: f32[1,256], index: 4, kind: input, shape index: {}]
  %s5 = inlined_call_operand.vmem [shape: f32[1,256], index: 5, kind: input, shape index: {}]
  %s6 = inlined_call_operand.<no memory space> [shape: f32[1,1], index: 6, kind: input, shape index: {}]
  %s7 = inlined_call_operand.vmem [shape: f32[16,1], index: 7, kind: output, shape index: {}]
  %s8 = sld [smem:[#allocation0]]
  $region77: #{tpu_custom_call.1} parent=0
    _
  %s10 = ssub.s32 1, %s8
  %s11 = scalar_select 0, %s10, %s8
  %v12 = vstv %s6
  %13 = vst [vmem:[#allocation2] sm:$0x1] %v12
  $region1: #{tpu_custom_call.1} parent=0
    #allocation3 [shape = 'u8[16384]{0}', space=vmem, size = 0x4000, scoped, tag = 'input window, operand 0']
    #allocation4 [shape = 's32[2]{0}', space=sflag, size = 0x8, scoped, tag = 'scoped memory for tpu_custom_call.1']
    #allocation5 [shape = 'u8[1048576]{0}', space=vmem, size = 0x100000, scoped, tag = 'input window, operand 1, single buffered']
    #allocation6 [shape = 's32[1]{0}', space=sflag, size = 0x4, scoped, tag = 'scoped memory for tpu_custom_call.1']
    #allocation7 [shape = 'u8[4096]{0}', space=vmem, size = 0x1000, scoped, tag = 'input window, operand 2, single buffered']
    #allocation8 [shape = 'u8[1048576]{0}', space=vmem, size = 0x100000, scoped, tag = 'input window, operand 3, single buffered']
    #allocation9 [shape = 's32[1]{0}', space=sflag, size = 0x4, scoped, tag = 'scoped memory for tpu_custom_call.1']
    %14 = vsyncpa [#allocation4], 0
    %s15 = scalar_lea.sflag [#allocation4], 1
    %16 = vsyncpa %s15, 0
    %17 = vsyncpa [#allocation6], 0
    %18 = vsyncpa [#allocation9], 0
    loop: start=0, step=1, limit=4
    $region2: #{tpu_custom_call.1} parent=1 // loop_pre_header
      _
    $region3: #{tpu_custom_call.1} parent=1 // loop_header
      %s20 = sphi 0, %s24
      %p21 = scmp.ge.s32.totalorder %s20, 4
      %s30 = sphi 0, %s32
      %s33 = sphi 0, %s30
      %s34 = sphi 0, %s33
      %s50 = sphi 0, %s34
      %s54 = sphi 0, %s54
      %s56 = sphi 0, %s54
      %s57 = sphi 0, %s56
      %s71 = sphi 0, %s57
      %s75 = sphi 0, %s75
      %s77 = sphi 0, %s75
      %s78 = sphi 0, %s77
      %s92 = sphi 0, %s78
      %s96 = sphi 0, %s96
      %s98 = sphi 0, %s96
      %s99 = sphi 0, %s98
      %s113 = sphi 0, %s99
      %s117 = sphi 0, %s117
      %s119 = sphi 0, %s117
      %s120 = sphi 0, %s119
      %s134 = sphi 0, %s120
      %s138 = sphi 0, %s138
      %s140 = sphi 0, %s138
      %s141 = sphi 0, %s140
      %s155 = sphi 0, %s141
      %s159 = sphi 0, %s159
      %s161 = sphi 0, %s159
      %s162 = sphi 0, %s161
      %s176 = sphi 0, %s162
      %s182 = sphi 0, %s184
      %s185 = sphi 0, %s182
      %s186 = sphi 0, %s185
      %s202 = sphi 0, %s186
    $region4: #{tpu_custom_call.1} parent=1 // loop_header_branch
      %23 = sbr.rel (%p21) target = $region8
    $region5: #{tpu_custom_call.1} parent=1 // loop_body
      %s25 = ssub.s32 %s20, 1
      %s26 = ssub.s32 %s20, 2
      %s27 = sadd.s32 %s20, 1
      %s28 = ssub.s32 %s20, %s27
      %p29 = scmp.eq.s32.totalorder %s28, 0
      %s31 = sadd.s32 %s30, 1
      %s32 = scalar_select %p29, %s30, %s31
      %p35 = pneg %p29
      %p36 = scmp.eq.s32.totalorder %s20, 1
      %p37 = por %p35, %p36
      %p38 = scmp.ne.s32.totalorder %s30, %s33
      %p39 = scmp.eq.s32.totalorder %s20, 0
      %p40 = por %p38, %p39
      %p41 = scmp.ne.s32.totalorder %s30, %s33
      %p42 = scmp.eq.s32.totalorder %s25, 1
      %p43 = por %p41, %p42
      %p44 = scmp.ne.s32.totalorder %s33, %s34
      %p45 = scmp.eq.s32.totalorder %s25, 0
      %p46 = por %p44, %p45
      %p47 = scmp.ne.s32.totalorder %s33, %s34
      %p48 = scmp.eq.s32.totalorder %s26, 1
      %p49 = por %p47, %p48
      %p51 = scmp.ne.s32.totalorder %s34, %s50
      %p52 = scmp.eq.s32.totalorder %s26, 0
      %p53 = por %p51, %p52
      %s55 = sadd.s32 %s54, 1
      %p58 = scmp.eq.s32.totalorder %s20, 1
      %p59 = scmp.ne.s32.totalorder %s54, %s56
      %p60 = scmp.eq.s32.totalorder %s20, 0
      %p61 = por %p59, %p60
      %p62 = scmp.ne.s32.totalorder %s54, %s56
      %p63 = scmp.eq.s32.totalorder %s25, 1
      %p64 = por %p62, %p63
      %p65 = scmp.ne.s32.totalorder %s56, %s57
      %p66 = scmp.eq.s32.totalorder %s25, 0
      %p67 = por %p65, %p66
      %p68 = scmp.ne.s32.totalorder %s56, %s57
      %p69 = scmp.eq.s32.totalorder %s26, 1
      %p70 = por %p68, %p69
      %p72 = scmp.ne.s32.totalorder %s57, %s71
      %p73 = scmp.eq.s32.totalorder %s26, 0
      %p74 = por %p72, %p73
      %s76 = sadd.s32 %s75, 1
      %p79 = scmp.eq.s32.totalorder %s20, 1
      %p80 = scmp.ne.s32.totalorder %s75, %s77
      %p81 = scmp.eq.s32.totalorder %s20, 0
      %p82 = por %p80, %p81
      %p83 = scmp.ne.s32.totalorder %s75, %s77
      %p84 = scmp.eq.s32.totalorder %s25, 1
      %p85 = por %p83, %p84
      %p86 = scmp.ne.s32.totalorder %s77, %s78
      %p87 = scmp.eq.s32.totalorder %s25, 0
      %p88 = por %p86, %p87
      %p89 = scmp.ne.s32.totalorder %s77, %s78
      %p90 = scmp.eq.s32.totalorder %s26, 1
      %p91 = por %p89, %p90
      %p93 = scmp.ne.s32.totalorder %s78, %s92
      %p94 = scmp.eq.s32.totalorder %s26, 0
      %p95 = por %p93, %p94
      %s97 = sadd.s32 %s96, 1
      %p100 = scmp.eq.s32.totalorder %s20, 1
      %p101 = scmp.ne.s32.totalorder %s96, %s98
      %p102 = scmp.eq.s32.totalorder %s20, 0
      %p103 = por %p101, %p102
      %p104 = scmp.ne.s32.totalorder %s96, %s98
      %p105 = scmp.eq.s32.totalorder %s25, 1
      %p106 = por %p104, %p105
      %p107 = scmp.ne.s32.totalorder %s98, %s99
      %p108 = scmp.eq.s32.totalorder %s25, 0
      %p109 = por %p107, %p108
      %p110 = scmp.ne.s32.totalorder %s98, %s99
      %p111 = scmp.eq.s32.totalorder %s26, 1
      %p112 = por %p110, %p111
      %p114 = scmp.ne.s32.totalorder %s99, %s113
      %p115 = scmp.eq.s32.totalorder %s26, 0
      %p116 = por %p114, %p115
      %s118 = sadd.s32 %s117, 1
      %p121 = scmp.eq.s32.totalorder %s20, 1
      %p122 = scmp.ne.s32.totalorder %s117, %s119
      %p123 = scmp.eq.s32.totalorder %s20, 0
      %p124 = por %p122, %p123
      %p125 = scmp.ne.s32.totalorder %s117, %s119
      %p126 = scmp.eq.s32.totalorder %s25, 1
      %p127 = por %p125, %p126
      %p128 = scmp.ne.s32.totalorder %s119, %s120
      %p129 = scmp.eq.s32.totalorder %s25, 0
      %p130 = por %p128, %p129
      %p131 = scmp.ne.s32.totalorder %s119, %s120
      %p132 = scmp.eq.s32.totalorder %s26, 1
      %p133 = por %p131, %p132
      %p135 = scmp.ne.s32.totalorder %s120, %s134
      %p136 = scmp.eq.s32.totalorder %s26, 0
      %p137 = por %p135, %p136
      %s139 = sadd.s32 %s138, 1
      %p142 = scmp.eq.s32.totalorder %s20, 1
      %p143 = scmp.ne.s32.totalorder %s138, %s140
      %p144 = scmp.eq.s32.totalorder %s20, 0
      %p145 = por %p143, %p144
      %p146 = scmp.ne.s32.totalorder %s138, %s140
      %p147 = scmp.eq.s32.totalorder %s25, 1
      %p148 = por %p146, %p147
      %p149 = scmp.ne.s32.totalorder %s140, %s141
      %p150 = scmp.eq.s32.totalorder %s25, 0
      %p151 = por %p149, %p150
      %p152 = scmp.ne.s32.totalorder %s140, %s141
      %p153 = scmp.eq.s32.totalorder %s26, 1
      %p154 = por %p152, %p153
      %p156 = scmp.ne.s32.totalorder %s141, %s155
      %p157 = scmp.eq.s32.totalorder %s26, 0
      %p158 = por %p156, %p157
      %s160 = sadd.s32 %s159, 1
      %p163 = scmp.eq.s32.totalorder %s20, 1
      %p164 = scmp.ne.s32.totalorder %s159, %s161
      %p165 = scmp.eq.s32.totalorder %s20, 0
      %p166 = por %p164, %p165
      %p167 = scmp.ne.s32.totalorder %s159, %s161
      %p168 = scmp.eq.s32.totalorder %s25, 1
      %p169 = por %p167, %p168
      %p170 = scmp.ne.s32.totalorder %s161, %s162
      %p171 = scmp.eq.s32.totalorder %s25, 0
      %p172 = por %p170, %p171
      %p173 = scmp.ne.s32.totalorder %s161, %s162
      %p174 = scmp.eq.s32.totalorder %s26, 1
      %p175 = por %p173, %p174
      %p177 = scmp.ne.s32.totalorder %s162, %s176
      %p178 = scmp.eq.s32.totalorder %s26, 0
      %p179 = por %p177, %p178
      %s180 = ssub.s32 %s20, %s27
      %p181 = scmp.eq.s32.totalorder %s180, 0
      %s183 = sadd.s32 %s182, 1
      %s184 = scalar_select %p181, %s182, %s183
      %p187 = pneg %p181
      %p188 = scmp.eq.s32.totalorder %s20, 1
      %p189 = por %p187, %p188
      %p190 = scmp.ne.s32.totalorder %s182, %s185
      %p191 = scmp.eq.s32.totalorder %s20, 0
      %p192 = por %p190, %p191
      %p193 = scmp.ne.s32.totalorder %s182, %s185
      %p194 = scmp.eq.s32.totalorder %s25, 1
      %p195 = por %p193, %p194
      %p196 = scmp.ne.s32.totalorder %s185, %s186
      %p197 = scmp.eq.s32.totalorder %s25, 0
      %p198 = por %p196, %p197
      %p199 = scmp.ne.s32.totalorder %s185, %s186
      %p200 = scmp.eq.s32.totalorder %s26, 1
      %p201 = por %p199, %p200
      %p203 = scmp.ne.s32.totalorder %s186, %s202
      %p204 = scmp.eq.s32.totalorder %s26, 0
      %p205 = por %p203, %p204
      %p206 = scmp.le.s32.totalorder 1, %s20
      %p207 = scmp.lt.s32.totalorder %s20, 3
      %p208 = pnand %p206, %p207
      %p209 = pneg %p208
      // Predicated region
      $region9: #{tpu_custom_call.1} parent=5 // pred_check
        _
      $region10: #{tpu_custom_call.1} parent=5 // pred_check_branch
        %211 = sbr.rel (%p208) target = $region12
      $region11: #{tpu_custom_call.1} parent=5 // pred_region
        %s212 = ssub.s32 %s20, 1
        // Predicated region
        $region13: #{tpu_custom_call.1} parent=11 // pred_check
          %p213 = pneg %p67
        $region14: #{tpu_custom_call.1} parent=11 // pred_check_branch
          %215 = sbr.rel (%p213) target = $region16
        $region15: #{tpu_custom_call.1} parent=11 // pred_region
          %217 = vsyncadd [#allocation6], 0
          %s218 = sshll.u32 %s1, 4
          %s219 = int_to_ptr.hbm [resolvable:$true] %s218
          %s220 = sshll.u32 [#allocation5], 4
          %s221 = int_to_ptr.vmem [resolvable:$true] %s220
          %226 = dma.hbm_to_vmem [thread:$0]  %s219, 32768, %s221, [#allocation6], 1024, 1024, 64
        $region16: #{tpu_custom_call.1} parent=11 // pred_fallthru
          _
        // Predicated region
        $region17: #{tpu_custom_call.1} parent=11 // pred_check
          %p227 = pneg %p88
        $region18: #{tpu_custom_call.1} parent=11 // pred_check_branch
          %229 = sbr.rel (%p227) target = $region20
        $region19: #{tpu_custom_call.1} parent=11 // pred_region
          %231 = vsyncadd [#allocation6], 0
          %s233 = sshll.u32 %s2, 4
          %s234 = int_to_ptr.hbm [resolvable:$true] %s233
          %s235 = sshll.u32 [#allocation7], 4
          %s236 = int_to_ptr.vmem [resolvable:$true] %s235
          %238 = dma.hbm_to_vmem [thread:$0]  %s234, 128, %s236, [#allocation6]
        $region20: #{tpu_custom_call.1} parent=11 // pred_fallthru
          _
        // Predicated region
        $region21: #{tpu_custom_call.1} parent=11 // pred_check
          %p239 = pneg %p109
        $region22: #{tpu_custom_call.1} parent=11 // pred_check_branch
          %241 = sbr.rel (%p239) target = $region24
        $region23: #{tpu_custom_call.1} parent=11 // pred_region
          %243 = vsyncadd [#allocation9], 0
          %s244 = sshll.u32 %s3, 4
          %s245 = int_to_ptr.hbm [resolvable:$true] %s244
          %s246 = sshll.u32 [#allocation8], 4
          %s247 = int_to_ptr.vmem [resolvable:$true] %s246
          %252 = dma.hbm_to_vmem [thread:$0]  %s245, 32768, %s247, [#allocation9], 256, 256, 16
        $region24: #{tpu_custom_call.1} parent=11 // pred_fallthru
          _
        // Predicated region
        $region25: #{tpu_custom_call.1} parent=11 // pred_check
          %p253 = pneg %p130
        $region26: #{tpu_custom_call.1} parent=11 // pred_check_branch
          %255 = sbr.rel (%p253) target = $region28
        $region27: #{tpu_custom_call.1} parent=11 // pred_region
          _
        $region28: #{tpu_custom_call.1} parent=11 // pred_fallthru
          _
        // Predicated region
        $region29: #{tpu_custom_call.1} parent=11 // pred_check
          %p256 = pneg %p151
        $region30: #{tpu_custom_call.1} parent=11 // pred_check_branch
          %258 = sbr.rel (%p256) target = $region32
        $region31: #{tpu_custom_call.1} parent=11 // pred_region
          _
        $region32: #{tpu_custom_call.1} parent=11 // pred_fallthru
          _
        // Predicated region
        $region33: #{tpu_custom_call.1} parent=11 // pred_check
          %p259 = pneg %p172
        $region34: #{tpu_custom_call.1} parent=11 // pred_check_branch
          %261 = sbr.rel (%p259) target = $region36
        $region35: #{tpu_custom_call.1} parent=11 // pred_region
          _
        $region36: #{tpu_custom_call.1} parent=11 // pred_fallthru
          _
      $region12: #{tpu_custom_call.1} parent=5 // pred_fallthru
        _
      %p262 = scmp.lt.s32.totalorder %s20, 2
      // Predicated region
      $region37: #{tpu_custom_call.1} parent=5 // pred_check
        %p263 = pneg %p262
      $region38: #{tpu_custom_call.1} parent=5 // pred_check_branch
        %265 = sbr.rel (%p263) target = $region40
      $region39: #{tpu_custom_call.1} parent=5 // pred_region
        // Predicated region
        $region41: #{tpu_custom_call.1} parent=39 // pred_check
          %p266 = pneg %p40
        $region42: #{tpu_custom_call.1} parent=39 // pred_check_branch
          %268 = sbr.rel (%p266) target = $region44
        $region43: #{tpu_custom_call.1} parent=39 // pred_region
          %s269 = sand.u32 %s30, 1
          %s270 = scalar_lea.sflag [#allocation4], %s269
          %s271 = sand.u32 %s30, 1
          %s272 = smul.addr %s271, 16
          %s273 = scalar_lea.vmem [#allocation3], %s272
          %275 = vsyncadd %s270, 0
          %s276 = smul.addr %s20, 2
          %s277 = smul.addr %s276, 8
          %s278 = scalar_lea.hbm %s0, %s277
          %s280 = sshll.u32 %s278, 4
          %s281 = int_to_ptr.hbm [resolvable:$true] %s280
          %s282 = sshll.u32 %s273, 4
          %s283 = int_to_ptr.vmem [resolvable:$true] %s282
          %285 = dma.hbm_to_vmem [thread:$0]  %s281, 256, %s283, %s270
        $region44: #{tpu_custom_call.1} parent=39 // pred_fallthru
          _
      $region40: #{tpu_custom_call.1} parent=5 // pred_fallthru
        _
      %p286 = scmp.le.s32.totalorder 1, %s20
      %p287 = scmp.lt.s32.totalorder %s20, 3
      %p288 = pnand %p286, %p287
      %p289 = pneg %p288
      // Predicated region
      $region45: #{tpu_custom_call.1} parent=5 // pred_check
        _
      $region46: #{tpu_custom_call.1} parent=5 // pred_check_branch
        %291 = sbr.rel (%p288) target = $region48
      $region47: #{tpu_custom_call.1} parent=5 // pred_region
        %s292 = ssub.s32 %s20, 1
        %s293 = sand.u32 %s33, 1
        %s294 = scalar_lea.sflag [#allocation4], %s293
        %s295 = sand.u32 %s33, 1
        %s296 = smul.addr %s295, 16
        %s297 = scalar_lea.vmem [#allocation3], %s296
        // Predicated region
        $region49: #{tpu_custom_call.1} parent=47 // pred_check
          %p298 = pneg %p46
        $region50: #{tpu_custom_call.1} parent=47 // pred_check_branch
          %300 = sbr.rel (%p298) target = $region52
        $region51: #{tpu_custom_call.1} parent=47 // pred_region
          %302 = dma.done %s294, 256
        $region52: #{tpu_custom_call.1} parent=47 // pred_fallthru
          _
        // Predicated region
        $region53: #{tpu_custom_call.1} parent=47 // pred_check
          %p303 = pneg %p67
        $region54: #{tpu_custom_call.1} parent=47 // pred_check_branch
          %305 = sbr.rel (%p303) target = $region56
        $region55: #{tpu_custom_call.1} parent=47 // pred_region
          %307 = dma.done [#allocation6], 32768
        $region56: #{tpu_custom_call.1} parent=47 // pred_fallthru
          _
        // Predicated region
        $region57: #{tpu_custom_call.1} parent=47 // pred_check
          %p308 = pneg %p88
        $region58: #{tpu_custom_call.1} parent=47 // pred_check_branch
          %310 = sbr.rel (%p308) target = $region60
        $region59: #{tpu_custom_call.1} parent=47 // pred_region
          %312 = dma.done [#allocation6], 128
        $region60: #{tpu_custom_call.1} parent=47 // pred_fallthru
          _
        // Predicated region
        $region61: #{tpu_custom_call.1} parent=47 // pred_check
          %p313 = pneg %p109
        $region62: #{tpu_custom_call.1} parent=47 // pred_check_branch
          %315 = sbr.rel (%p313) target = $region64
        $region63: #{tpu_custom_call.1} parent=47 // pred_region
          %317 = dma.done [#allocation9], 32768
        $region64: #{tpu_custom_call.1} parent=47 // pred_fallthru
          _
        %s318 = sand.u32 %s33, 1
        %s319 = scalar_lea.sflag [#allocation4], %s318
        %s320 = sand.u32 %s33, 1
        %s321 = smul.addr %s320, 16
        %s322 = scalar_lea.vmem [#allocation3], %s321
        %p323 = pneg %p46
        %p324 = pneg %p43
        %p325 = pneg %p67
        %p326 = pneg %p64
        %p327 = pneg %p88
        %p328 = pneg %p85
        %p329 = pneg %p109
        %p330 = pneg %p106
        %p331 = pneg %p130
        %p332 = pneg %p127
        %p333 = pneg %p151
        %p334 = pneg %p148
        %p335 = pneg %p172
        %p336 = pneg %p169
        %p337 = pneg %p198
        %p338 = pneg %p195
        %p339 = scmp.lt.s32.totalorder %s25, 1
        %s340 = scalar_select %p339, %s25, 1
        %s341 = smul.addr %s340, 8
        %s342 = scalar_lea.vmem %s7, %s341
        %p343 = scmp.lt.s32.totalorder %s25, 1
        %s344 = scalar_select %p343, %s25, 1
        %s345 = smul.addr %s344, 8
        %s346 = scalar_lea.vmem %s7, %s345
        %v347 = vld [vmem:[%s297] sm:$0xff]
        %v348 = vld [vmem:[%s297 + $0x8] sm:$0xff]
        %v349 = vld [vmem:[#allocation5] sm:$0xff]
        %v350 = vld [vmem:[#allocation5 + $0x8] sm:$0xff]
        %v351 = vld [vmem:[#allocation5 + $0x10] sm:$0xff]
        %v352 = vld [vmem:[#allocation5 + $0x18] sm:$0xff]
        %v353 = vld [vmem:[#allocation5 + $0x20] sm:$0xff]
        %v354 = vld [vmem:[#allocation5 + $0x28] sm:$0xff]
        %v355 = vld [vmem:[#allocation5 + $0x30] sm:$0xff]
        %v356 = vld [vmem:[#allocation5 + $0x38] sm:$0xff]
        %v357 = vld [vmem:[#allocation5 + $0x40] sm:$0xff]
        %v358 = vld [vmem:[#allocation5 + $0x48] sm:$0xff]
        %v359 = vld [vmem:[#allocation5 + $0x50] sm:$0xff]
        %v360 = vld [vmem:[#allocation5 + $0x58] sm:$0xff]
        %v361 = vld [vmem:[#allocation5 + $0x60] sm:$0xff]
        %v362 = vld [vmem:[#allocation5 + $0x68] sm:$0xff]
        %v363 = vld [vmem:[#allocation5 + $0x70] sm:$0xff]
        %v364 = vld [vmem:[#allocation5 + $0x78] sm:$0xff]
        %v365 = vld [vmem:[#allocation5 + $0x80] sm:$0xff]
        %v366 = vld [vmem:[#allocation5 + $0x88] sm:$0xff]
        %v367 = vld [vmem:[#allocation5 + $0x90] sm:$0xff]
        %v368 = vld [vmem:[#allocation5 + $0x98] sm:$0xff]
        %v369 = vld [vmem:[#allocation5 + $0xa0] sm:$0xff]
        %v370 = vld [vmem:[#allocation5 + $0xa8] sm:$0xff]
        %v371 = vld [vmem:[#allocation5 + $0xb0] sm:$0xff]
        %v372 = vld [vmem:[#allocation5 + $0xb8] sm:$0xff]
        %v373 = vld [vmem:[#allocation5 + $0xc0] sm:$0xff]
        %v374 = vld [vmem:[#allocation5 + $0xc8] sm:$0xff]
        %v375 = vld [vmem:[#allocation5 + $0xd0] sm:$0xff]
        %v376 = vld [vmem:[#allocation5 + $0xd8] sm:$0xff]
        %v377 = vld [vmem:[#allocation5 + $0xe0] sm:$0xff]
        %v378 = vld [vmem:[#allocation5 + $0xe8] sm:$0xff]
        %v379 = vld [vmem:[#allocation5 + $0xf0] sm:$0xff]
        %v380 = vld [vmem:[#allocation5 + $0xf8] sm:$0xff]
        %v381 = vld [vmem:[#allocation5 + $0x100] sm:$0xff]
        %v382 = vld [vmem:[#allocation5 + $0x108] sm:$0xff]
        %v383 = vld [vmem:[#allocation5 + $0x110] sm:$0xff]
        %v384 = vld [vmem:[#allocation5 + $0x118] sm:$0xff]
        %v385 = vld [vmem:[#allocation5 + $0x120] sm:$0xff]
        %v386 = vld [vmem:[#allocation5 + $0x128] sm:$0xff]
        %v387 = vld [vmem:[#allocation5 + $0x130] sm:$0xff]
        %v388 = vld [vmem:[#allocation5 + $0x138] sm:$0xff]
        %v389 = vld [vmem:[#allocation5 + $0x140] sm:$0xff]
        %v390 = vld [vmem:[#allocation5 + $0x148] sm:$0xff]
        %v391 = vld [vmem:[#allocation5 + $0x150] sm:$0xff]
        %v392 = vld [vmem:[#allocation5 + $0x158] sm:$0xff]
        %v393 = vld [vmem:[#allocation5 + $0x160] sm:$0xff]
        %v394 = vld [vmem:[#allocation5 + $0x168] sm:$0xff]
        %v395 = vld [vmem:[#allocation5 + $0x170] sm:$0xff]
        %v396 = vld [vmem:[#allocation5 + $0x178] sm:$0xff]
        %v397 = vld [vmem:[#allocation5 + $0x180] sm:$0xff]
        %v398 = vld [vmem:[#allocation5 + $0x188] sm:$0xff]
        %v399 = vld [vmem:[#allocation5 + $0x190] sm:$0xff]
        %v400 = vld [vmem:[#allocation5 + $0x198] sm:$0xff]
        %v401 = vld [vmem:[#allocation5 + $0x1a0] sm:$0xff]
        %v402 = vld [vmem:[#allocation5 + $0x1a8] sm:$0xff]
        %v403 = vld [vmem:[#allocation5 + $0x1b0] sm:$0xff]
        %v404 = vld [vmem:[#allocation5 + $0x1b8] sm:$0xff]
        %v405 = vld [vmem:[#allocation5 + $0x1c0] sm:$0xff]
        %v406 = vld [vmem:[#allocation5 + $0x1c8] sm:$0xff]
        %v407 = vld [vmem:[#allocation5 + $0x1d0] sm:$0xff]
        %v408 = vld [vmem:[#allocation5 + $0x1d8] sm:$0xff]
        %v409 = vld [vmem:[#allocation5 + $0x1e0] sm:$0xff]
        %v410 = vld [vmem:[#allocation5 + $0x1e8] sm:$0xff]
        %v411 = vld [vmem:[#allocation5 + $0x1f0] sm:$0xff]
        %v412 = vld [vmem:[#allocation5 + $0x1f8] sm:$0xff]
        %v413 = vld [vmem:[#allocation5 + $0x200] sm:$0xff]
        %v414 = vld [vmem:[#allocation5 + $0x208] sm:$0xff]
        %v415 = vld [vmem:[#allocation5 + $0x210] sm:$0xff]
        %v416 = vld [vmem:[#allocation5 + $0x218] sm:$0xff]
        %v417 = vld [vmem:[#allocation5 + $0x220] sm:$0xff]
        %v418 = vld [vmem:[#allocation5 + $0x228] sm:$0xff]
        %v419 = vld [vmem:[#allocation5 + $0x230] sm:$0xff]
        %v420 = vld [vmem:[#allocation5 + $0x238] sm:$0xff]
        %v421 = vld [vmem:[#allocation5 + $0x240] sm:$0xff]
        %v422 = vld [vmem:[#allocation5 + $0x248] sm:$0xff]
        %v423 = vld [vmem:[#allocation5 + $0x250] sm:$0xff]
        %v424 = vld [vmem:[#allocation5 + $0x258] sm:$0xff]
        %v425 = vld [vmem:[#allocation5 + $0x260] sm:$0xff]
        %v426 = vld [vmem:[#allocation5 + $0x268] sm:$0xff]
        %v427 = vld [vmem:[#allocation5 + $0x270] sm:$0xff]
        %v428 = vld [vmem:[#allocation5 + $0x278] sm:$0xff]
        %v429 = vld [vmem:[#allocation5 + $0x280] sm:$0xff]
        %v430 = vld [vmem:[#allocation5 + $0x288] sm:$0xff]
        %v431 = vld [vmem:[#allocation5 + $0x290] sm:$0xff]
        %v432 = vld [vmem:[#allocation5 + $0x298] sm:$0xff]
        %v433 = vld [vmem:[#allocation5 + $0x2a0] sm:$0xff]
        %v434 = vld [vmem:[#allocation5 + $0x2a8] sm:$0xff]
        %v435 = vld [vmem:[#allocation5 + $0x2b0] sm:$0xff]
        %v436 = vld [vmem:[#allocation5 + $0x2b8] sm:$0xff]
        %v437 = vld [vmem:[#allocation5 + $0x2c0] sm:$0xff]
        %v438 = vld [vmem:[#allocation5 + $0x2c8] sm:$0xff]
        %v439 = vld [vmem:[#allocation5 + $0x2d0] sm:$0xff]
        %v440 = vld [vmem:[#allocation5 + $0x2d8] sm:$0xff]
        %v441 = vld [vmem:[#allocation5 + $0x2e0] sm:$0xff]
        %v442 = vld [vmem:[#allocation5 + $0x2e8] sm:$0xff]
        %v443 = vld [vmem:[#allocation5 + $0x2f0] sm:$0xff]
        %v444 = vld [vmem:[#allocation5 + $0x2f8] sm:$0xff]
        %v445 = vld [vmem:[#allocation5 + $0x300] sm:$0xff]
        %v446 = vld [vmem:[#allocation5 + $0x308] sm:$0xff]
        %v447 = vld [vmem:[#allocation5 + $0x310] sm:$0xff]
        %v448 = vld [vmem:[#allocation5 + $0x318] sm:$0xff]
        %v449 = vld [vmem:[#allocation5 + $0x320] sm:$0xff]
        %v450 = vld [vmem:[#allocation5 + $0x328] sm:$0xff]
        %v451 = vld [vmem:[#allocation5 + $0x330] sm:$0xff]
        %v452 = vld [vmem:[#allocation5 + $0x338] sm:$0xff]
        %v453 = vld [vmem:[#allocation5 + $0x340] sm:$0xff]
        %v454 = vld [vmem:[#allocation5 + $0x348] sm:$0xff]
        %v455 = vld [vmem:[#allocation5 + $0x350] sm:$0xff]
        %v456 = vld [vmem:[#allocation5 + $0x358] sm:$0xff]
        %v457 = vld [vmem:[#allocation5 + $0x360] sm:$0xff]
        %v458 = vld [vmem:[#allocation5 + $0x368] sm:$0xff]
        %v459 = vld [vmem:[#allocation5 + $0x370] sm:$0xff]
        %v460 = vld [vmem:[#allocation5 + $0x378] sm:$0xff]
        %v461 = vld [vmem:[#allocation5 + $0x380] sm:$0xff]
        %v462 = vld [vmem:[#allocation5 + $0x388] sm:$0xff]
        %v463 = vld [vmem:[#allocation5 + $0x390] sm:$0xff]
        %v464 = vld [vmem:[#allocation5 + $0x398] sm:$0xff]
        %v465 = vld [vmem:[#allocation5 + $0x3a0] sm:$0xff]
        %v466 = vld [vmem:[#allocation5 + $0x3a8] sm:$0xff]
        %v467 = vld [vmem:[#allocation5 + $0x3b0] sm:$0xff]
        %v468 = vld [vmem:[#allocation5 + $0x3b8] sm:$0xff]
        %v469 = vld [vmem:[#allocation5 + $0x3c0] sm:$0xff]
        %v470 = vld [vmem:[#allocation5 + $0x3c8] sm:$0xff]
        %v471 = vld [vmem:[#allocation5 + $0x3d0] sm:$0xff]
        %v472 = vld [vmem:[#allocation5 + $0x3d8] sm:$0xff]
        %v473 = vld [vmem:[#allocation5 + $0x3e0] sm:$0xff]
        %v474 = vld [vmem:[#allocation5 + $0x3e8] sm:$0xff]
        %v475 = vld [vmem:[#allocation5 + $0x3f0] sm:$0xff]
        %v476 = vld [vmem:[#allocation5 + $0x3f8] sm:$0xff]
        %v477 = vld [vmem:[#allocation5 + $0x400] sm:$0xff]
        %v478 = vld [vmem:[#allocation5 + $0x408] sm:$0xff]
        %v479 = vld [vmem:[#allocation5 + $0x410] sm:$0xff]
        %v480 = vld [vmem:[#allocation5 + $0x418] sm:$0xff]
        %v481 = vld [vmem:[#allocation5 + $0x420] sm:$0xff]
        %v482 = vld [vmem:[#allocation5 + $0x428] sm:$0xff]
        %v483 = vld [vmem:[#allocation5 + $0x430] sm:$0xff]
        %v484 = vld [vmem:[#allocation5 + $0x438] sm:$0xff]
        %v485 = vld [vmem:[#allocation5 + $0x440] sm:$0xff]
        %v486 = vld [vmem:[#allocation5 + $0x448] sm:$0xff]
        %v487 = vld [vmem:[#allocation5 + $0x450] sm:$0xff]
        %v488 = vld [vmem:[#allocation5 + $0x458] sm:$0xff]
        %v489 = vld [vmem:[#allocation5 + $0x460] sm:$0xff]
        %v490 = vld [vmem:[#allocation5 + $0x468] sm:$0xff]
        %v491 = vld [vmem:[#allocation5 + $0x470] sm:$0xff]
        %v492 = vld [vmem:[#allocation5 + $0x478] sm:$0xff]
        %v493 = vld [vmem:[#allocation5 + $0x480] sm:$0xff]
        %v494 = vld [vmem:[#allocation5 + $0x488] sm:$0xff]
        %v495 = vld [vmem:[#allocation5 + $0x490] sm:$0xff]
        %v496 = vld [vmem:[#allocation5 + $0x498] sm:$0xff]
        %v497 = vld [vmem:[#allocation5 + $0x4a0] sm:$0xff]
        %v498 = vld [vmem:[#allocation5 + $0x4a8] sm:$0xff]
        %v499 = vld [vmem:[#allocation5 + $0x4b0] sm:$0xff]
        %v500 = vld [vmem:[#allocation5 + $0x4b8] sm:$0xff]
        %v501 = vld [vmem:[#allocation5 + $0x4c0] sm:$0xff]
        %v502 = vld [vmem:[#allocation5 + $0x4c8] sm:$0xff]
        %v503 = vld [vmem:[#allocation5 + $0x4d0] sm:$0xff]
        %v504 = vld [vmem:[#allocation5 + $0x4d8] sm:$0xff]
        %v505 = vld [vmem:[#allocation5 + $0x4e0] sm:$0xff]
        %v506 = vld [vmem:[#allocation5 + $0x4e8] sm:$0xff]
        %v507 = vld [vmem:[#allocation5 + $0x4f0] sm:$0xff]
        %v508 = vld [vmem:[#allocation5 + $0x4f8] sm:$0xff]
        %v509 = vld [vmem:[#allocation5 + $0x500] sm:$0xff]
        %v510 = vld [vmem:[#allocation5 + $0x508] sm:$0xff]
        %v511 = vld [vmem:[#allocation5 + $0x510] sm:$0xff]
        %v512 = vld [vmem:[#allocation5 + $0x518] sm:$0xff]
        %v513 = vld [vmem:[#allocation5 + $0x520] sm:$0xff]
        %v514 = vld [vmem:[#allocation5 + $0x528] sm:$0xff]
        %v515 = vld [vmem:[#allocation5 + $0x530] sm:$0xff]
        %v516 = vld [vmem:[#allocation5 + $0x538] sm:$0xff]
        %v517 = vld [vmem:[#allocation5 + $0x540] sm:$0xff]
        %v518 = vld [vmem:[#allocation5 + $0x548] sm:$0xff]
        %v519 = vld [vmem:[#allocation5 + $0x550] sm:$0xff]
        %v520 = vld [vmem:[#allocation5 + $0x558] sm:$0xff]
        %v521 = vld [vmem:[#allocation5 + $0x560] sm:$0xff]
        %v522 = vld [vmem:[#allocation5 + $0x568] sm:$0xff]
        %v523 = vld [vmem:[#allocation5 + $0x570] sm:$0xff]
        %v524 = vld [vmem:[#allocation5 + $0x578] sm:$0xff]
        %v525 = vld [vmem:[#allocation5 + $0x580] sm:$0xff]
        %v526 = vld [vmem:[#allocation5 + $0x588] sm:$0xff]
        %v527 = vld [vmem:[#allocation5 + $0x590] sm:$0xff]
        %v528 = vld [vmem:[#allocation5 + $0x598] sm:$0xff]
        %v529 = vld [vmem:[#allocation5 + $0x5a0] sm:$0xff]
        %v530 = vld [vmem:[#allocation5 + $0x5a8] sm:$0xff]
        %v531 = vld [vmem:[#allocation5 + $0x5b0] sm:$0xff]
        %v532 = vld [vmem:[#allocation5 + $0x5b8] sm:$0xff]
        %v533 = vld [vmem:[#allocation5 + $0x5c0] sm:$0xff]
        %v534 = vld [vmem:[#allocation5 + $0x5c8] sm:$0xff]
        %v535 = vld [vmem:[#allocation5 + $0x5d0] sm:$0xff]
        %v536 = vld [vmem:[#allocation5 + $0x5d8] sm:$0xff]
        %v537 = vld [vmem:[#allocation5 + $0x5e0] sm:$0xff]
        %v538 = vld [vmem:[#allocation5 + $0x5e8] sm:$0xff]
        %v539 = vld [vmem:[#allocation5 + $0x5f0] sm:$0xff]
        %v540 = vld [vmem:[#allocation5 + $0x5f8] sm:$0xff]
        %v541 = vld [vmem:[#allocation5 + $0x600] sm:$0xff]
        %v542 = vld [vmem:[#allocation5 + $0x608] sm:$0xff]
        %v543 = vld [vmem:[#allocation5 + $0x610] sm:$0xff]
        %v544 = vld [vmem:[#allocation5 + $0x618] sm:$0xff]
        %v545 = vld [vmem:[#allocation5 + $0x620] sm:$0xff]
        %v546 = vld [vmem:[#allocation5 + $0x628] sm:$0xff]
        %v547 = vld [vmem:[#allocation5 + $0x630] sm:$0xff]
        %v548 = vld [vmem:[#allocation5 + $0x638] sm:$0xff]
        %v549 = vld [vmem:[#allocation5 + $0x640] sm:$0xff]
        %v550 = vld [vmem:[#allocation5 + $0x648] sm:$0xff]
        %v551 = vld [vmem:[#allocation5 + $0x650] sm:$0xff]
        %v552 = vld [vmem:[#allocation5 + $0x658] sm:$0xff]
        %v553 = vld [vmem:[#allocation5 + $0x660] sm:$0xff]
        %v554 = vld [vmem:[#allocation5 + $0x668] sm:$0xff]
        %v555 = vld [vmem:[#allocation5 + $0x670] sm:$0xff]
        %v556 = vld [vmem:[#allocation5 + $0x678] sm:$0xff]
        %v557 = vld [vmem:[#allocation5 + $0x680] sm:$0xff]
        %v558 = vld [vmem:[#allocation5 + $0x688] sm:$0xff]
        %v559 = vld [vmem:[#allocation5 + $0x690] sm:$0xff]
        %v560 = vld [vmem:[#allocation5 + $0x698] sm:$0xff]
        %v561 = vld [vmem:[#allocation5 + $0x6a0] sm:$0xff]
        %v562 = vld [vmem:[#allocation5 + $0x6a8] sm:$0xff]
        %v563 = vld [vmem:[#allocation5 + $0x6b0] sm:$0xff]
        %v564 = vld [vmem:[#allocation5 + $0x6b8] sm:$0xff]
        %v565 = vld [vmem:[#allocation5 + $0x6c0] sm:$0xff]
        %v566 = vld [vmem:[#allocation5 + $0x6c8] sm:$0xff]
        %v567 = vld [vmem:[#allocation5 + $0x6d0] sm:$0xff]
        %v568 = vld [vmem:[#allocation5 + $0x6d8] sm:$0xff]
        %v569 = vld [vmem:[#allocation5 + $0x6e0] sm:$0xff]
        %v570 = vld [vmem:[#allocation5 + $0x6e8] sm:$0xff]
        %v571 = vld [vmem:[#allocation5 + $0x6f0] sm:$0xff]
        %v572 = vld [vmem:[#allocation5 + $0x6f8] sm:$0xff]
        %v573 = vld [vmem:[#allocation5 + $0x700] sm:$0xff]
        %v574 = vld [vmem:[#allocation5 + $0x708] sm:$0xff]
        %v575 = vld [vmem:[#allocation5 + $0x710] sm:$0xff]
        %v576 = vld [vmem:[#allocation5 + $0x718] sm:$0xff]
        %v577 = vld [vmem:[#allocation5 + $0x720] sm:$0xff]
        %v578 = vld [vmem:[#allocation5 + $0x728] sm:$0xff]
        %v579 = vld [vmem:[#allocation5 + $0x730] sm:$0xff]
        %v580 = vld [vmem:[#allocation5 + $0x738] sm:$0xff]
        %v581 = vld [vmem:[#allocation5 + $0x740] sm:$0xff]
        %v582 = vld [vmem:[#allocation5 + $0x748] sm:$0xff]
        %v583 = vld [vmem:[#allocation5 + $0x750] sm:$0xff]
        %v584 = vld [vmem:[#allocation5 + $0x758] sm:$0xff]
        %v585 = vld [vmem:[#allocation5 + $0x760] sm:$0xff]
        %v586 = vld [vmem:[#allocation5 + $0x768] sm:$0xff]
        %v587 = vld [vmem:[#allocation5 + $0x770] sm:$0xff]
        %v588 = vld [vmem:[#allocation5 + $0x778] sm:$0xff]
        %v589 = vld [vmem:[#allocation5 + $0x780] sm:$0xff]
        %v590 = vld [vmem:[#allocation5 + $0x788] sm:$0xff]
        %v591 = vld [vmem:[#allocation5 + $0x790] sm:$0xff]
        %v592 = vld [vmem:[#allocation5 + $0x798] sm:$0xff]
        %v593 = vld [vmem:[#allocation5 + $0x7a0] sm:$0xff]
        %v594 = vld [vmem:[#allocation5 + $0x7a8] sm:$0xff]
        %v595 = vld [vmem:[#allocation5 + $0x7b0] sm:$0xff]
        %v596 = vld [vmem:[#allocation5 + $0x7b8] sm:$0xff]
        %v597 = vld [vmem:[#allocation5 + $0x7c0] sm:$0xff]
        %v598 = vld [vmem:[#allocation5 + $0x7c8] sm:$0xff]
        %v599 = vld [vmem:[#allocation5 + $0x7d0] sm:$0xff]
        %v600 = vld [vmem:[#allocation5 + $0x7d8] sm:$0xff]
        %v601 = vld [vmem:[#allocation5 + $0x7e0] sm:$0xff]
        %v602 = vld [vmem:[#allocation5 + $0x7e8] sm:$0xff]
        %v603 = vld [vmem:[#allocation5 + $0x7f0] sm:$0xff]
        %v604 = vld [vmem:[#allocation5 + $0x7f8] sm:$0xff]
        %v605 = vld [vmem:[#allocation7] sm:$0xff]
        %v607 = vperm.slane %v605, 0
        %v608 = vperm.slane %v605, 1
        %v609 = vperm.slane %v605, 2
        %v610 = vperm.slane %v605, 3
        %v611 = vperm.slane %v605, 4
        %v612 = vperm.slane %v605, 5
        %v613 = vperm.slane %v605, 6
        %v614 = vperm.slane %v605, 7
        %623 = vmatpush.msra.mxu0 %v469
        %624 = vmatpush.msra.mxu0 %v461
        %625 = vmatpush.msra.mxu0 %v453
        %626 = vmatpush.msra.mxu0 %v445
        %627 = vmatpush.msra.mxu0 %v437
        %628 = vmatpush.msra.mxu0 %v429
        %629 = vmatpush.msra.mxu0 %v421
        %630 = vmatpush.msra.mxu0 %v413
        %631 = vmatpush.msra.mxu0 %v405
        %632 = vmatpush.msra.mxu0 %v397
        %633 = vmatpush.msra.mxu0 %v389
        %634 = vmatpush.msra.mxu0 %v381
        %635 = vmatpush.msra.mxu0 %v373
        %636 = vmatpush.msra.mxu0 %v365
        %637 = vmatpush.msra.mxu0 %v357
        %638 = vmatpush.msra.mxu0 %v349
        %639 = vmatmul.f32.gmra.mxu0 %v347
        %v640 = vpop.f32.mrf.mxu0
        %v641 = vadd.f32 %v607, %v640
        %642 = vdwg.mxu0
        %643 = vmatpush.msra.mxu0 %v597
        %644 = vmatpush.msra.mxu0 %v589
        %645 = vmatpush.msra.mxu0 %v581
        %646 = vmatpush.msra.mxu0 %v573
        %647 = vmatpush.msra.mxu0 %v565
        %648 = vmatpush.msra.mxu0 %v557
        %649 = vmatpush.msra.mxu0 %v549
        %650 = vmatpush.msra.mxu0 %v541
        %651 = vmatpush.msra.mxu0 %v533
        %652 = vmatpush.msra.mxu0 %v525
        %653 = vmatpush.msra.mxu0 %v517
        %654 = vmatpush.msra.mxu0 %v509
        %655 = vmatpush.msra.mxu0 %v501
        %656 = vmatpush.msra.mxu0 %v493
        %657 = vmatpush.msra.mxu0 %v485
        %658 = vmatpush.msra.mxu0 %v477
        %659 = vmatmul.f32.gmra.mxu0 %v348
        %v660 = vpop.f32.mrf.mxu0
        %v661 = vadd.f32 %v641, %v660
        %662 = vdwg.mxu0
        %663 = vmatpush.msra.mxu0 %v470
        %664 = vmatpush.msra.mxu0 %v462
        %665 = vmatpush.msra.mxu0 %v454
        %666 = vmatpush.msra.mxu0 %v446
        %667 = vmatpush.msra.mxu0 %v438
        %668 = vmatpush.msra.mxu0 %v430
        %669 = vmatpush.msra.mxu0 %v422
        %670 = vmatpush.msra.mxu0 %v414
        %671 = vmatpush.msra.mxu0 %v406
        %672 = vmatpush.msra.mxu0 %v398
        %673 = vmatpush.msra.mxu0 %v390
        %674 = vmatpush.msra.mxu0 %v382
        %675 = vmatpush.msra.mxu0 %v374
        %676 = vmatpush.msra.mxu0 %v366
        %677 = vmatpush.msra.mxu0 %v358
        %678 = vmatpush.msra.mxu0 %v350
        %679 = vmatmul.f32.gmra.mxu0 %v347
        %v680 = vpop.f32.mrf.mxu0
        %v681 = vadd.f32 %v608, %v680
        %682 = vdwg.mxu0
        %683 = vmatpush.msra.mxu0 %v598
        %684 = vmatpush.msra.mxu0 %v590
        %685 = vmatpush.msra.mxu0 %v582
        %686 = vmatpush.msra.mxu0 %v574
        %687 = vmatpush.msra.mxu0 %v566
        %688 = vmatpush.msra.mxu0 %v558
        %689 = vmatpush.msra.mxu0 %v550
        %690 = vmatpush.msra.mxu0 %v542
        %691 = vmatpush.msra.mxu0 %v534
        %692 = vmatpush.msra.mxu0 %v526
        %693 = vmatpush.msra.mxu0 %v518
        %694 = vmatpush.msra.mxu0 %v510
        %695 = vmatpush.msra.mxu0 %v502
        %696 = vmatpush.msra.mxu0 %v494
        %697 = vmatpush.msra.mxu0 %v486
        %698 = vmatpush.msra.mxu0 %v478
        %699 = vmatmul.f32.gmra.mxu0 %v348
        %v700 = vpop.f32.mrf.mxu0
        %v701 = vadd.f32 %v681, %v700
        %702 = vdwg.mxu0
        %703 = vmatpush.msra.mxu0 %v471
        %704 = vmatpush.msra.mxu0 %v463
        %705 = vmatpush.msra.mxu0 %v455
        %706 = vmatpush.msra.mxu0 %v447
        %707 = vmatpush.msra.mxu0 %v439
        %708 = vmatpush.msra.mxu0 %v431
        %709 = vmatpush.msra.mxu0 %v423
        %710 = vmatpush.msra.mxu0 %v415
        %711 = vmatpush.msra.mxu0 %v407
        %712 = vmatpush.msra.mxu0 %v399
        %713 = vmatpush.msra.mxu0 %v391
        %714 = vmatpush.msra.mxu0 %v383
        %715 = vmatpush.msra.mxu0 %v375
        %716 = vmatpush.msra.mxu0 %v367
        %717 = vmatpush.msra.mxu0 %v359
        %718 = vmatpush.msra.mxu0 %v351
        %719 = vmatmul.f32.gmra.mxu0 %v347
        %v720 = vpop.f32.mrf.mxu0
        %v721 = vadd.f32 %v609, %v720
        %722 = vdwg.mxu0
        %723 = vmatpush.msra.mxu0 %v599
        %724 = vmatpush.msra.mxu0 %v591
        %725 = vmatpush.msra.mxu0 %v583
        %726 = vmatpush.msra.mxu0 %v575
        %727 = vmatpush.msra.mxu0 %v567
        %728 = vmatpush.msra.mxu0 %v559
        %729 = vmatpush.msra.mxu0 %v551
        %730 = vmatpush.msra.mxu0 %v543
        %731 = vmatpush.msra.mxu0 %v535
        %732 = vmatpush.msra.mxu0 %v527
        %733 = vmatpush.msra.mxu0 %v519
        %734 = vmatpush.msra.mxu0 %v511
        %735 = vmatpush.msra.mxu0 %v503
        %736 = vmatpush.msra.mxu0 %v495
        %737 = vmatpush.msra.mxu0 %v487
        %738 = vmatpush.msra.mxu0 %v479
        %739 = vmatmul.f32.gmra.mxu0 %v348
        %v740 = vpop.f32.mrf.mxu0
        %v741 = vadd.f32 %v721, %v740
        %742 = vdwg.mxu0
        %743 = vmatpush.msra.mxu0 %v472
        %744 = vmatpush.msra.mxu0 %v464
        %745 = vmatpush.msra.mxu0 %v456
        %746 = vmatpush.msra.mxu0 %v448
        %747 = vmatpush.msra.mxu0 %v440
        %748 = vmatpush.msra.mxu0 %v432
        %749 = vmatpush.msra.mxu0 %v424
        %750 = vmatpush.msra.mxu0 %v416
        %751 = vmatpush.msra.mxu0 %v408
        %752 = vmatpush.msra.mxu0 %v400
        %753 = vmatpush.msra.mxu0 %v392
        %754 = vmatpush.msra.mxu0 %v384
        %755 = vmatpush.msra.mxu0 %v376
        %756 = vmatpush.msra.mxu0 %v368
        %757 = vmatpush.msra.mxu0 %v360
        %758 = vmatpush.msra.mxu0 %v352
        %759 = vmatmul.f32.gmra.mxu0 %v347
        %v760 = vpop.f32.mrf.mxu0
        %v761 = vadd.f32 %v610, %v760
        %762 = vdwg.mxu0
        %763 = vmatpush.msra.mxu0 %v600
        %764 = vmatpush.msra.mxu0 %v592
        %765 = vmatpush.msra.mxu0 %v584
        %766 = vmatpush.msra.mxu0 %v576
        %767 = vmatpush.msra.mxu0 %v568
        %768 = vmatpush.msra.mxu0 %v560
        %769 = vmatpush.msra.mxu0 %v552
        %770 = vmatpush.msra.mxu0 %v544
        %771 = vmatpush.msra.mxu0 %v536
        %772 = vmatpush.msra.mxu0 %v528
        %773 = vmatpush.msra.mxu0 %v520
        %774 = vmatpush.msra.mxu0 %v512
        %775 = vmatpush.msra.mxu0 %v504
        %776 = vmatpush.msra.mxu0 %v496
        %777 = vmatpush.msra.mxu0 %v488
        %778 = vmatpush.msra.mxu0 %v480
        %779 = vmatmul.f32.gmra.mxu0 %v348
        %v780 = vpop.f32.mrf.mxu0
        %v781 = vadd.f32 %v761, %v780
        %782 = vdwg.mxu0
        %783 = vmatpush.msra.mxu0 %v473
        %784 = vmatpush.msra.mxu0 %v465
        %785 = vmatpush.msra.mxu0 %v457
        %786 = vmatpush.msra.mxu0 %v449
        %787 = vmatpush.msra.mxu0 %v441
        %788 = vmatpush.msra.mxu0 %v433
        %789 = vmatpush.msra.mxu0 %v425
        %790 = vmatpush.msra.mxu0 %v417
        %791 = vmatpush.msra.mxu0 %v409
        %792 = vmatpush.msra.mxu0 %v401
        %793 = vmatpush.msra.mxu0 %v393
        %794 = vmatpush.msra.mxu0 %v385
        %795 = vmatpush.msra.mxu0 %v377
        %796 = vmatpush.msra.mxu0 %v369
        %797 = vmatpush.msra.mxu0 %v361
        %798 = vmatpush.msra.mxu0 %v353
        %799 = vmatmul.f32.gmra.mxu0 %v347
        %v800 = vpop.f32.mrf.mxu0
        %v801 = vadd.f32 %v611, %v800
        %802 = vdwg.mxu0
        %803 = vmatpush.msra.mxu0 %v601
        %804 = vmatpush.msra.mxu0 %v593
        %805 = vmatpush.msra.mxu0 %v585
        %806 = vmatpush.msra.mxu0 %v577
        %807 = vmatpush.msra.mxu0 %v569
        %808 = vmatpush.msra.mxu0 %v561
        %809 = vmatpush.msra.mxu0 %v553
        %810 = vmatpush.msra.mxu0 %v545
        %811 = vmatpush.msra.mxu0 %v537
        %812 = vmatpush.msra.mxu0 %v529
        %813 = vmatpush.msra.mxu0 %v521
        %814 = vmatpush.msra.mxu0 %v513
        %815 = vmatpush.msra.mxu0 %v505
        %816 = vmatpush.msra.mxu0 %v497
        %817 = vmatpush.msra.mxu0 %v489
        %818 = vmatpush.msra.mxu0 %v481
        %819 = vmatmul.f32.gmra.mxu0 %v348
        %v820 = vpop.f32.mrf.mxu0
        %v821 = vadd.f32 %v801, %v820
        %822 = vdwg.mxu0
        %823 = vmatpush.msra.mxu0 %v474
        %824 = vmatpush.msra.mxu0 %v466
        %825 = vmatpush.msra.mxu0 %v458
        %826 = vmatpush.msra.mxu0 %v450
        %827 = vmatpush.msra.mxu0 %v442
        %828 = vmatpush.msra.mxu0 %v434
        %829 = vmatpush.msra.mxu0 %v426
        %830 = vmatpush.msra.mxu0 %v418
        %831 = vmatpush.msra.mxu0 %v410
        %832 = vmatpush.msra.mxu0 %v402
        %833 = vmatpush.msra.mxu0 %v394
        %834 = vmatpush.msra.mxu0 %v386
        %835 = vmatpush.msra.mxu0 %v378
        %836 = vmatpush.msra.mxu0 %v370
        %837 = vmatpush.msra.mxu0 %v362
        %838 = vmatpush.msra.mxu0 %v354
        %839 = vmatmul.f32.gmra.mxu0 %v347
        %v840 = vpop.f32.mrf.mxu0
        %v841 = vadd.f32 %v612, %v840
        %842 = vdwg.mxu0
        %843 = vmatpush.msra.mxu0 %v602
        %844 = vmatpush.msra.mxu0 %v594
        %845 = vmatpush.msra.mxu0 %v586
        %846 = vmatpush.msra.mxu0 %v578
        %847 = vmatpush.msra.mxu0 %v570
        %848 = vmatpush.msra.mxu0 %v562
        %849 = vmatpush.msra.mxu0 %v554
        %850 = vmatpush.msra.mxu0 %v546
        %851 = vmatpush.msra.mxu0 %v538
        %852 = vmatpush.msra.mxu0 %v530
        %853 = vmatpush.msra.mxu0 %v522
        %854 = vmatpush.msra.mxu0 %v514
        %855 = vmatpush.msra.mxu0 %v506
        %856 = vmatpush.msra.mxu0 %v498
        %857 = vmatpush.msra.mxu0 %v490
        %858 = vmatpush.msra.mxu0 %v482
        %859 = vmatmul.f32.gmra.mxu0 %v348
        %v860 = vpop.f32.mrf.mxu0
        %v861 = vadd.f32 %v841, %v860
        %862 = vdwg.mxu0
        %863 = vmatpush.msra.mxu0 %v475
        %864 = vmatpush.msra.mxu0 %v467
        %865 = vmatpush.msra.mxu0 %v459
        %866 = vmatpush.msra.mxu0 %v451
        %867 = vmatpush.msra.mxu0 %v443
        %868 = vmatpush.msra.mxu0 %v435
        %869 = vmatpush.msra.mxu0 %v427
        %870 = vmatpush.msra.mxu0 %v419
        %871 = vmatpush.msra.mxu0 %v411
        %872 = vmatpush.msra.mxu0 %v403
        %873 = vmatpush.msra.mxu0 %v395
        %874 = vmatpush.msra.mxu0 %v387
        %875 = vmatpush.msra.mxu0 %v379
        %876 = vmatpush.msra.mxu0 %v371
        %877 = vmatpush.msra.mxu0 %v363
        %878 = vmatpush.msra.mxu0 %v355
        %879 = vmatmul.f32.gmra.mxu0 %v347
        %v880 = vpop.f32.mrf.mxu0
        %v881 = vadd.f32 %v613, %v880
        %882 = vdwg.mxu0
        %883 = vmatpush.msra.mxu0 %v603
        %884 = vmatpush.msra.mxu0 %v595
        %885 = vmatpush.msra.mxu0 %v587
        %886 = vmatpush.msra.mxu0 %v579
        %887 = vmatpush.msra.mxu0 %v571
        %888 = vmatpush.msra.mxu0 %v563
        %889 = vmatpush.msra.mxu0 %v555
        %890 = vmatpush.msra.mxu0 %v547
        %891 = vmatpush.msra.mxu0 %v539
        %892 = vmatpush.msra.mxu0 %v531
        %893 = vmatpush.msra.mxu0 %v523
        %894 = vmatpush.msra.mxu0 %v515
        %895 = vmatpush.msra.mxu0 %v507
        %896 = vmatpush.msra.mxu0 %v499
        %897 = vmatpush.msra.mxu0 %v491
        %898 = vmatpush.msra.mxu0 %v483
        %899 = vmatmul.f32.gmra.mxu0 %v348
        %v900 = vpop.f32.mrf.mxu0
        %v901 = vadd.f32 %v881, %v900
        %902 = vdwg.mxu0
        %903 = vmatpush.msra.mxu0 %v476
        %904 = vmatpush.msra.mxu0 %v468
        %905 = vmatpush.msra.mxu0 %v460
        %906 = vmatpush.msra.mxu0 %v452
        %907 = vmatpush.msra.mxu0 %v444
        %908 = vmatpush.msra.mxu0 %v436
        %909 = vmatpush.msra.mxu0 %v428
        %910 = vmatpush.msra.mxu0 %v420
        %911 = vmatpush.msra.mxu0 %v412
        %912 = vmatpush.msra.mxu0 %v404
        %913 = vmatpush.msra.mxu0 %v396
        %914 = vmatpush.msra.mxu0 %v388
        %915 = vmatpush.msra.mxu0 %v380
        %916 = vmatpush.msra.mxu0 %v372
        %917 = vmatpush.msra.mxu0 %v364
        %918 = vmatpush.msra.mxu0 %v356
        %919 = vmatmul.f32.gmra.mxu0 %v347
        %v920 = vpop.f32.mrf.mxu0
        %v921 = vadd.f32 %v614, %v920
        %922 = vdwg.mxu0
        %923 = vmatpush.msra.mxu0 %v604
        %924 = vmatpush.msra.mxu0 %v596
        %925 = vmatpush.msra.mxu0 %v588
        %926 = vmatpush.msra.mxu0 %v580
        %927 = vmatpush.msra.mxu0 %v572
        %928 = vmatpush.msra.mxu0 %v564
        %929 = vmatpush.msra.mxu0 %v556
        %930 = vmatpush.msra.mxu0 %v548
        %931 = vmatpush.msra.mxu0 %v540
        %932 = vmatpush.msra.mxu0 %v532
        %933 = vmatpush.msra.mxu0 %v524
        %934 = vmatpush.msra.mxu0 %v516
        %935 = vmatpush.msra.mxu0 %v508
        %936 = vmatpush.msra.mxu0 %v500
        %937 = vmatpush.msra.mxu0 %v492
        %938 = vmatpush.msra.mxu0 %v484
        %939 = vmatmul.f32.gmra.mxu0 %v348
        %v940 = vpop.f32.mrf.mxu0
        %v941 = vadd.f32 %v921, %v940
        %942 = vdwg.mxu0
        %v943 = vmax.f32 %v661, 0.0
        %v944 = vmax.f32 %v701, 0.0
        %v945 = vmax.f32 %v741, 0.0
        %v946 = vmax.f32 %v781, 0.0
        %v947 = vmax.f32 %v821, 0.0
        %v948 = vmax.f32 %v861, 0.0
        %v949 = vmax.f32 %v901, 0.0
        %v950 = vmax.f32 %v941, 0.0
        %v951 = vld [vmem:[#allocation8] sm:$0xff]
        %v952 = vld [vmem:[#allocation8 + $0x8] sm:$0xff]
        %v953 = vld [vmem:[#allocation8 + $0x10] sm:$0xff]
        %v954 = vld [vmem:[#allocation8 + $0x18] sm:$0xff]
        %v955 = vld [vmem:[#allocation8 + $0x20] sm:$0xff]
        %v956 = vld [vmem:[#allocation8 + $0x28] sm:$0xff]
        %v957 = vld [vmem:[#allocation8 + $0x30] sm:$0xff]
        %v958 = vld [vmem:[#allocation8 + $0x38] sm:$0xff]
        %v959 = vld [vmem:[#allocation8 + $0x40] sm:$0xff]
        %v960 = vld [vmem:[#allocation8 + $0x48] sm:$0xff]
        %v961 = vld [vmem:[#allocation8 + $0x50] sm:$0xff]
        %v962 = vld [vmem:[#allocation8 + $0x58] sm:$0xff]
        %v963 = vld [vmem:[#allocation8 + $0x60] sm:$0xff]
        %v964 = vld [vmem:[#allocation8 + $0x68] sm:$0xff]
        %v965 = vld [vmem:[#allocation8 + $0x70] sm:$0xff]
        %v966 = vld [vmem:[#allocation8 + $0x78] sm:$0xff]
        %v967 = vld [vmem:[#allocation8 + $0x80] sm:$0xff]
        %v968 = vld [vmem:[#allocation8 + $0x88] sm:$0xff]
        %v969 = vld [vmem:[#allocation8 + $0x90] sm:$0xff]
        %v970 = vld [vmem:[#allocation8 + $0x98] sm:$0xff]
        %v971 = vld [vmem:[#allocation8 + $0xa0] sm:$0xff]
        %v972 = vld [vmem:[#allocation8 + $0xa8] sm:$0xff]
        %v973 = vld [vmem:[#allocation8 + $0xb0] sm:$0xff]
        %v974 = vld [vmem:[#allocation8 + $0xb8] sm:$0xff]
        %v975 = vld [vmem:[#allocation8 + $0xc0] sm:$0xff]
        %v976 = vld [vmem:[#allocation8 + $0xc8] sm:$0xff]
        %v977 = vld [vmem:[#allocation8 + $0xd0] sm:$0xff]
        %v978 = vld [vmem:[#allocation8 + $0xd8] sm:$0xff]
        %v979 = vld [vmem:[#allocation8 + $0xe0] sm:$0xff]
        %v980 = vld [vmem:[#allocation8 + $0xe8] sm:$0xff]
        %v981 = vld [vmem:[#allocation8 + $0xf0] sm:$0xff]
        %v982 = vld [vmem:[#allocation8 + $0xf8] sm:$0xff]
        %v983 = vld [vmem:[#allocation8 + $0x100] sm:$0xff]
        %v984 = vld [vmem:[#allocation8 + $0x108] sm:$0xff]
        %v985 = vld [vmem:[#allocation8 + $0x110] sm:$0xff]
        %v986 = vld [vmem:[#allocation8 + $0x118] sm:$0xff]
        %v987 = vld [vmem:[#allocation8 + $0x120] sm:$0xff]
        %v988 = vld [vmem:[#allocation8 + $0x128] sm:$0xff]
        %v989 = vld [vmem:[#allocation8 + $0x130] sm:$0xff]
        %v990 = vld [vmem:[#allocation8 + $0x138] sm:$0xff]
        %v991 = vld [vmem:[#allocation8 + $0x140] sm:$0xff]
        %v992 = vld [vmem:[#allocation8 + $0x148] sm:$0xff]
        %v993 = vld [vmem:[#allocation8 + $0x150] sm:$0xff]
        %v994 = vld [vmem:[#allocation8 + $0x158] sm:$0xff]
        %v995 = vld [vmem:[#allocation8 + $0x160] sm:$0xff]
        %v996 = vld [vmem:[#allocation8 + $0x168] sm:$0xff]
        %v997 = vld [vmem:[#allocation8 + $0x170] sm:$0xff]
        %v998 = vld [vmem:[#allocation8 + $0x178] sm:$0xff]
        %v999 = vld [vmem:[#allocation8 + $0x180] sm:$0xff]
        %v1000 = vld [vmem:[#allocation8 + $0x188] sm:$0xff]
        %v1001 = vld [vmem:[#allocation8 + $0x190] sm:$0xff]
        %v1002 = vld [vmem:[#allocation8 + $0x198] sm:$0xff]
        %v1003 = vld [vmem:[#allocation8 + $0x1a0] sm:$0xff]
        %v1004 = vld [vmem:[#allocation8 + $0x1a8] sm:$0xff]
        %v1005 = vld [vmem:[#allocation8 + $0x1b0] sm:$0xff]
        %v1006 = vld [vmem:[#allocation8 + $0x1b8] sm:$0xff]
        %v1007 = vld [vmem:[#allocation8 + $0x1c0] sm:$0xff]
        %v1008 = vld [vmem:[#allocation8 + $0x1c8] sm:$0xff]
        %v1009 = vld [vmem:[#allocation8 + $0x1d0] sm:$0xff]
        %v1010 = vld [vmem:[#allocation8 + $0x1d8] sm:$0xff]
        %v1011 = vld [vmem:[#allocation8 + $0x1e0] sm:$0xff]
        %v1012 = vld [vmem:[#allocation8 + $0x1e8] sm:$0xff]
        %v1013 = vld [vmem:[#allocation8 + $0x1f0] sm:$0xff]
        %v1014 = vld [vmem:[#allocation8 + $0x1f8] sm:$0xff]
        %v1015 = vld [vmem:[#allocation8 + $0x200] sm:$0xff]
        %v1016 = vld [vmem:[#allocation8 + $0x208] sm:$0xff]
        %v1017 = vld [vmem:[#allocation8 + $0x210] sm:$0xff]
        %v1018 = vld [vmem:[#allocation8 + $0x218] sm:$0xff]
        %v1019 = vld [vmem:[#allocation8 + $0x220] sm:$0xff]
        %v1020 = vld [vmem:[#allocation8 + $0x228] sm:$0xff]
        %v1021 = vld [vmem:[#allocation8 + $0x230] sm:$0xff]
        %v1022 = vld [vmem:[#allocation8 + $0x238] sm:$0xff]
        %v1023 = vld [vmem:[#allocation8 + $0x240] sm:$0xff]
        %v1024 = vld [vmem:[#allocation8 + $0x248] sm:$0xff]
        %v1025 = vld [vmem:[#allocation8 + $0x250] sm:$0xff]
        %v1026 = vld [vmem:[#allocation8 + $0x258] sm:$0xff]
        %v1027 = vld [vmem:[#allocation8 + $0x260] sm:$0xff]
        %v1028 = vld [vmem:[#allocation8 + $0x268] sm:$0xff]
        %v1029 = vld [vmem:[#allocation8 + $0x270] sm:$0xff]
        %v1030 = vld [vmem:[#allocation8 + $0x278] sm:$0xff]
        %v1031 = vld [vmem:[#allocation8 + $0x280] sm:$0xff]
        %v1032 = vld [vmem:[#allocation8 + $0x288] sm:$0xff]
        %v1033 = vld [vmem:[#allocation8 + $0x290] sm:$0xff]
        %v1034 = vld [vmem:[#allocation8 + $0x298] sm:$0xff]
        %v1035 = vld [vmem:[#allocation8 + $0x2a0] sm:$0xff]
        %v1036 = vld [vmem:[#allocation8 + $0x2a8] sm:$0xff]
        %v1037 = vld [vmem:[#allocation8 + $0x2b0] sm:$0xff]
        %v1038 = vld [vmem:[#allocation8 + $0x2b8] sm:$0xff]
        %v1039 = vld [vmem:[#allocation8 + $0x2c0] sm:$0xff]
        %v1040 = vld [vmem:[#allocation8 + $0x2c8] sm:$0xff]
        %v1041 = vld [vmem:[#allocation8 + $0x2d0] sm:$0xff]
        %v1042 = vld [vmem:[#allocation8 + $0x2d8] sm:$0xff]
        %v1043 = vld [vmem:[#allocation8 + $0x2e0] sm:$0xff]
        %v1044 = vld [vmem:[#allocation8 + $0x2e8] sm:$0xff]
        %v1045 = vld [vmem:[#allocation8 + $0x2f0] sm:$0xff]
        %v1046 = vld [vmem:[#allocation8 + $0x2f8] sm:$0xff]
        %v1047 = vld [vmem:[#allocation8 + $0x300] sm:$0xff]
        %v1048 = vld [vmem:[#allocation8 + $0x308] sm:$0xff]
        %v1049 = vld [vmem:[#allocation8 + $0x310] sm:$0xff]
        %v1050 = vld [vmem:[#allocation8 + $0x318] sm:$0xff]
        %v1051 = vld [vmem:[#allocation8 + $0x320] sm:$0xff]
        %v1052 = vld [vmem:[#allocation8 + $0x328] sm:$0xff]
        %v1053 = vld [vmem:[#allocation8 + $0x330] sm:$0xff]
        %v1054 = vld [vmem:[#allocation8 + $0x338] sm:$0xff]
        %v1055 = vld [vmem:[#allocation8 + $0x340] sm:$0xff]
        %v1056 = vld [vmem:[#allocation8 + $0x348] sm:$0xff]
        %v1057 = vld [vmem:[#allocation8 + $0x350] sm:$0xff]
        %v1058 = vld [vmem:[#allocation8 + $0x358] sm:$0xff]
        %v1059 = vld [vmem:[#allocation8 + $0x360] sm:$0xff]
        %v1060 = vld [vmem:[#allocation8 + $0x368] sm:$0xff]
        %v1061 = vld [vmem:[#allocation8 + $0x370] sm:$0xff]
        %v1062 = vld [vmem:[#allocation8 + $0x378] sm:$0xff]
        %v1063 = vld [vmem:[#allocation8 + $0x380] sm:$0xff]
        %v1064 = vld [vmem:[#allocation8 + $0x388] sm:$0xff]
        %v1065 = vld [vmem:[#allocation8 + $0x390] sm:$0xff]
        %v1066 = vld [vmem:[#allocation8 + $0x398] sm:$0xff]
        %v1067 = vld [vmem:[#allocation8 + $0x3a0] sm:$0xff]
        %v1068 = vld [vmem:[#allocation8 + $0x3a8] sm:$0xff]
        %v1069 = vld [vmem:[#allocation8 + $0x3b0] sm:$0xff]
        %v1070 = vld [vmem:[#allocation8 + $0x3b8] sm:$0xff]
        %v1071 = vld [vmem:[#allocation8 + $0x3c0] sm:$0xff]
        %v1072 = vld [vmem:[#allocation8 + $0x3c8] sm:$0xff]
        %v1073 = vld [vmem:[#allocation8 + $0x3d0] sm:$0xff]
        %v1074 = vld [vmem:[#allocation8 + $0x3d8] sm:$0xff]
        %v1075 = vld [vmem:[#allocation8 + $0x3e0] sm:$0xff]
        %v1076 = vld [vmem:[#allocation8 + $0x3e8] sm:$0xff]
        %v1077 = vld [vmem:[#allocation8 + $0x3f0] sm:$0xff]
        %v1078 = vld [vmem:[#allocation8 + $0x3f8] sm:$0xff]
        %v1079 = vld [vmem:[#allocation8 + $0x400] sm:$0xff]
        %v1080 = vld [vmem:[#allocation8 + $0x408] sm:$0xff]
        %v1081 = vld [vmem:[#allocation8 + $0x410] sm:$0xff]
        %v1082 = vld [vmem:[#allocation8 + $0x418] sm:$0xff]
        %v1083 = vld [vmem:[#allocation8 + $0x420] sm:$0xff]
        %v1084 = vld [vmem:[#allocation8 + $0x428] sm:$0xff]
        %v1085 = vld [vmem:[#allocation8 + $0x430] sm:$0xff]
        %v1086 = vld [vmem:[#allocation8 + $0x438] sm:$0xff]
        %v1087 = vld [vmem:[#allocation8 + $0x440] sm:$0xff]
        %v1088 = vld [vmem:[#allocation8 + $0x448] sm:$0xff]
        %v1089 = vld [vmem:[#allocation8 + $0x450] sm:$0xff]
        %v1090 = vld [vmem:[#allocation8 + $0x458] sm:$0xff]
        %v1091 = vld [vmem:[#allocation8 + $0x460] sm:$0xff]
        %v1092 = vld [vmem:[#allocation8 + $0x468] sm:$0xff]
        %v1093 = vld [vmem:[#allocation8 + $0x470] sm:$0xff]
        %v1094 = vld [vmem:[#allocation8 + $0x478] sm:$0xff]
        %v1095 = vld [vmem:[#allocation8 + $0x480] sm:$0xff]
        %v1096 = vld [vmem:[#allocation8 + $0x488] sm:$0xff]
        %v1097 = vld [vmem:[#allocation8 + $0x490] sm:$0xff]
        %v1098 = vld [vmem:[#allocation8 + $0x498] sm:$0xff]
        %v1099 = vld [vmem:[#allocation8 + $0x4a0] sm:$0xff]
        %v1100 = vld [vmem:[#allocation8 + $0x4a8] sm:$0xff]
        %v1101 = vld [vmem:[#allocation8 + $0x4b0] sm:$0xff]
        %v1102 = vld [vmem:[#allocation8 + $0x4b8] sm:$0xff]
        %v1103 = vld [vmem:[#allocation8 + $0x4c0] sm:$0xff]
        %v1104 = vld [vmem:[#allocation8 + $0x4c8] sm:$0xff]
        %v1105 = vld [vmem:[#allocation8 + $0x4d0] sm:$0xff]
        %v1106 = vld [vmem:[#allocation8 + $0x4d8] sm:$0xff]
        %v1107 = vld [vmem:[#allocation8 + $0x4e0] sm:$0xff]
        %v1108 = vld [vmem:[#allocation8 + $0x4e8] sm:$0xff]
        %v1109 = vld [vmem:[#allocation8 + $0x4f0] sm:$0xff]
        %v1110 = vld [vmem:[#allocation8 + $0x4f8] sm:$0xff]
        %v1111 = vld [vmem:[#allocation8 + $0x500] sm:$0xff]
        %v1112 = vld [vmem:[#allocation8 + $0x508] sm:$0xff]
        %v1113 = vld [vmem:[#allocation8 + $0x510] sm:$0xff]
        %v1114 = vld [vmem:[#allocation8 + $0x518] sm:$0xff]
        %v1115 = vld [vmem:[#allocation8 + $0x520] sm:$0xff]
        %v1116 = vld [vmem:[#allocation8 + $0x528] sm:$0xff]
        %v1117 = vld [vmem:[#allocation8 + $0x530] sm:$0xff]
        %v1118 = vld [vmem:[#allocation8 + $0x538] sm:$0xff]
        %v1119 = vld [vmem:[#allocation8 + $0x540] sm:$0xff]
        %v1120 = vld [vmem:[#allocation8 + $0x548] sm:$0xff]
        %v1121 = vld [vmem:[#allocation8 + $0x550] sm:$0xff]
        %v1122 = vld [vmem:[#allocation8 + $0x558] sm:$0xff]
        %v1123 = vld [vmem:[#allocation8 + $0x560] sm:$0xff]
        %v1124 = vld [vmem:[#allocation8 + $0x568] sm:$0xff]
        %v1125 = vld [vmem:[#allocation8 + $0x570] sm:$0xff]
        %v1126 = vld [vmem:[#allocation8 + $0x578] sm:$0xff]
        %v1127 = vld [vmem:[#allocation8 + $0x580] sm:$0xff]
        %v1128 = vld [vmem:[#allocation8 + $0x588] sm:$0xff]
        %v1129 = vld [vmem:[#allocation8 + $0x590] sm:$0xff]
        %v1130 = vld [vmem:[#allocation8 + $0x598] sm:$0xff]
        %v1131 = vld [vmem:[#allocation8 + $0x5a0] sm:$0xff]
        %v1132 = vld [vmem:[#allocation8 + $0x5a8] sm:$0xff]
        %v1133 = vld [vmem:[#allocation8 + $0x5b0] sm:$0xff]
        %v1134 = vld [vmem:[#allocation8 + $0x5b8] sm:$0xff]
        %v1135 = vld [vmem:[#allocation8 + $0x5c0] sm:$0xff]
        %v1136 = vld [vmem:[#allocation8 + $0x5c8] sm:$0xff]
        %v1137 = vld [vmem:[#allocation8 + $0x5d0] sm:$0xff]
        %v1138 = vld [vmem:[#allocation8 + $0x5d8] sm:$0xff]
        %v1139 = vld [vmem:[#allocation8 + $0x5e0] sm:$0xff]
        %v1140 = vld [vmem:[#allocation8 + $0x5e8] sm:$0xff]
        %v1141 = vld [vmem:[#allocation8 + $0x5f0] sm:$0xff]
        %v1142 = vld [vmem:[#allocation8 + $0x5f8] sm:$0xff]
        %v1143 = vld [vmem:[#allocation8 + $0x600] sm:$0xff]
        %v1144 = vld [vmem:[#allocation8 + $0x608] sm:$0xff]
        %v1145 = vld [vmem:[#allocation8 + $0x610] sm:$0xff]
        %v1146 = vld [vmem:[#allocation8 + $0x618] sm:$0xff]
        %v1147 = vld [vmem:[#allocation8 + $0x620] sm:$0xff]
        %v1148 = vld [vmem:[#allocation8 + $0x628] sm:$0xff]
        %v1149 = vld [vmem:[#allocation8 + $0x630] sm:$0xff]
        %v1150 = vld [vmem:[#allocation8 + $0x638] sm:$0xff]
        %v1151 = vld [vmem:[#allocation8 + $0x640] sm:$0xff]
        %v1152 = vld [vmem:[#allocation8 + $0x648] sm:$0xff]
        %v1153 = vld [vmem:[#allocation8 + $0x650] sm:$0xff]
        %v1154 = vld [vmem:[#allocation8 + $0x658] sm:$0xff]
        %v1155 = vld [vmem:[#allocation8 + $0x660] sm:$0xff]
        %v1156 = vld [vmem:[#allocation8 + $0x668] sm:$0xff]
        %v1157 = vld [vmem:[#allocation8 + $0x670] sm:$0xff]
        %v1158 = vld [vmem:[#allocation8 + $0x678] sm:$0xff]
        %v1159 = vld [vmem:[#allocation8 + $0x680] sm:$0xff]
        %v1160 = vld [vmem:[#allocation8 + $0x688] sm:$0xff]
        %v1161 = vld [vmem:[#allocation8 + $0x690] sm:$0xff]
        %v1162 = vld [vmem:[#allocation8 + $0x698] sm:$0xff]
        %v1163 = vld [vmem:[#allocation8 + $0x6a0] sm:$0xff]
        %v1164 = vld [vmem:[#allocation8 + $0x6a8] sm:$0xff]
        %v1165 = vld [vmem:[#allocation8 + $0x6b0] sm:$0xff]
        %v1166 = vld [vmem:[#allocation8 + $0x6b8] sm:$0xff]
        %v1167 = vld [vmem:[#allocation8 + $0x6c0] sm:$0xff]
        %v1168 = vld [vmem:[#allocation8 + $0x6c8] sm:$0xff]
        %v1169 = vld [vmem:[#allocation8 + $0x6d0] sm:$0xff]
        %v1170 = vld [vmem:[#allocation8 + $0x6d8] sm:$0xff]
        %v1171 = vld [vmem:[#allocation8 + $0x6e0] sm:$0xff]
        %v1172 = vld [vmem:[#allocation8 + $0x6e8] sm:$0xff]
        %v1173 = vld [vmem:[#allocation8 + $0x6f0] sm:$0xff]
        %v1174 = vld [vmem:[#allocation8 + $0x6f8] sm:$0xff]
        %v1175 = vld [vmem:[#allocation8 + $0x700] sm:$0xff]
        %v1176 = vld [vmem:[#allocation8 + $0x708] sm:$0xff]
        %v1177 = vld [vmem:[#allocation8 + $0x710] sm:$0xff]
        %v1178 = vld [vmem:[#allocation8 + $0x718] sm:$0xff]
        %v1179 = vld [vmem:[#allocation8 + $0x720] sm:$0xff]
        %v1180 = vld [vmem:[#allocation8 + $0x728] sm:$0xff]
        %v1181 = vld [vmem:[#allocation8 + $0x730] sm:$0xff]
        %v1182 = vld [vmem:[#allocation8 + $0x738] sm:$0xff]
        %v1183 = vld [vmem:[#allocation8 + $0x740] sm:$0xff]
        %v1184 = vld [vmem:[#allocation8 + $0x748] sm:$0xff]
        %v1185 = vld [vmem:[#allocation8 + $0x750] sm:$0xff]
        %v1186 = vld [vmem:[#allocation8 + $0x758] sm:$0xff]
        %v1187 = vld [vmem:[#allocation8 + $0x760] sm:$0xff]
        %v1188 = vld [vmem:[#allocation8 + $0x768] sm:$0xff]
        %v1189 = vld [vmem:[#allocation8 + $0x770] sm:$0xff]
        %v1190 = vld [vmem:[#allocation8 + $0x778] sm:$0xff]
        %v1191 = vld [vmem:[#allocation8 + $0x780] sm:$0xff]
        %v1192 = vld [vmem:[#allocation8 + $0x788] sm:$0xff]
        %v1193 = vld [vmem:[#allocation8 + $0x790] sm:$0xff]
        %v1194 = vld [vmem:[#allocation8 + $0x798] sm:$0xff]
        %v1195 = vld [vmem:[#allocation8 + $0x7a0] sm:$0xff]
        %v1196 = vld [vmem:[#allocation8 + $0x7a8] sm:$0xff]
        %v1197 = vld [vmem:[#allocation8 + $0x7b0] sm:$0xff]
        %v1198 = vld [vmem:[#allocation8 + $0x7b8] sm:$0xff]
        %v1199 = vld [vmem:[#allocation8 + $0x7c0] sm:$0xff]
        %v1200 = vld [vmem:[#allocation8 + $0x7c8] sm:$0xff]
        %v1201 = vld [vmem:[#allocation8 + $0x7d0] sm:$0xff]
        %v1202 = vld [vmem:[#allocation8 + $0x7d8] sm:$0xff]
        %v1203 = vld [vmem:[#allocation8 + $0x7e0] sm:$0xff]
        %v1204 = vld [vmem:[#allocation8 + $0x7e8] sm:$0xff]
        %v1205 = vld [vmem:[#allocation8 + $0x7f0] sm:$0xff]
        %v1206 = vld [vmem:[#allocation8 + $0x7f8] sm:$0xff]
        %v1207 = vld [vmem:[%s4] sm:$0x3]
        %v1209 = vperm.slane %v1207, 0
        %v1210 = vperm.slane %v1207, 1
        %1213 = vmatpush.msra.mxu0 %v981
        %1214 = vmatpush.msra.mxu0 %v979
        %1215 = vmatpush.msra.mxu0 %v977
        %1216 = vmatpush.msra.mxu0 %v975
        %1217 = vmatpush.msra.mxu0 %v973
        %1218 = vmatpush.msra.mxu0 %v971
        %1219 = vmatpush.msra.mxu0 %v969
        %1220 = vmatpush.msra.mxu0 %v967
        %1221 = vmatpush.msra.mxu0 %v965
        %1222 = vmatpush.msra.mxu0 %v963
        %1223 = vmatpush.msra.mxu0 %v961
        %1224 = vmatpush.msra.mxu0 %v959
        %1225 = vmatpush.msra.mxu0 %v957
        %1226 = vmatpush.msra.mxu0 %v955
        %1227 = vmatpush.msra.mxu0 %v953
        %1228 = vmatpush.msra.mxu0 %v951
        %1229 = vmatmul.f32.gmra.mxu0 %v943
        %v1230 = vpop.f32.mrf.mxu0
        %v1231 = vadd.f32 %v1209, %v1230
        %1232 = vdwg.mxu0
        %1233 = vmatpush.msra.mxu0 %v1013
        %1234 = vmatpush.msra.mxu0 %v1011
        %1235 = vmatpush.msra.mxu0 %v1009
        %1236 = vmatpush.msra.mxu0 %v1007
        %1237 = vmatpush.msra.mxu0 %v1005
        %1238 = vmatpush.msra.mxu0 %v1003
        %1239 = vmatpush.msra.mxu0 %v1001
        %1240 = vmatpush.msra.mxu0 %v999
        %1241 = vmatpush.msra.mxu0 %v997
        %1242 = vmatpush.msra.mxu0 %v995
        %1243 = vmatpush.msra.mxu0 %v993
        %1244 = vmatpush.msra.mxu0 %v991
        %1245 = vmatpush.msra.mxu0 %v989
        %1246 = vmatpush.msra.mxu0 %v987
        %1247 = vmatpush.msra.mxu0 %v985
        %1248 = vmatpush.msra.mxu0 %v983
        %1249 = vmatmul.f32.gmra.mxu0 %v944
        %v1250 = vpop.f32.mrf.mxu0
        %v1251 = vadd.f32 %v1231, %v1250
        %1252 = vdwg.mxu0
        %1253 = vmatpush.msra.mxu0 %v1045
        %1254 = vmatpush.msra.mxu0 %v1043
        %1255 = vmatpush.msra.mxu0 %v1041
        %1256 = vmatpush.msra.mxu0 %v1039
        %1257 = vmatpush.msra.mxu0 %v1037
        %1258 = vmatpush.msra.mxu0 %v1035
        %1259 = vmatpush.msra.mxu0 %v1033
        %1260 = vmatpush.msra.mxu0 %v1031
        %1261 = vmatpush.msra.mxu0 %v1029
        %1262 = vmatpush.msra.mxu0 %v1027
        %1263 = vmatpush.msra.mxu0 %v1025
        %1264 = vmatpush.msra.mxu0 %v1023
        %1265 = vmatpush.msra.mxu0 %v1021
        %1266 = vmatpush.msra.mxu0 %v1019
        %1267 = vmatpush.msra.mxu0 %v1017
        %1268 = vmatpush.msra.mxu0 %v1015
        %1269 = vmatmul.f32.gmra.mxu0 %v945
        %v1270 = vpop.f32.mrf.mxu0
        %v1271 = vadd.f32 %v1251, %v1270
        %1272 = vdwg.mxu0
        %1273 = vmatpush.msra.mxu0 %v1077
        %1274 = vmatpush.msra.mxu0 %v1075
        %1275 = vmatpush.msra.mxu0 %v1073
        %1276 = vmatpush.msra.mxu0 %v1071
        %1277 = vmatpush.msra.mxu0 %v1069
        %1278 = vmatpush.msra.mxu0 %v1067
        %1279 = vmatpush.msra.mxu0 %v1065
        %1280 = vmatpush.msra.mxu0 %v1063
        %1281 = vmatpush.msra.mxu0 %v1061
        %1282 = vmatpush.msra.mxu0 %v1059
        %1283 = vmatpush.msra.mxu0 %v1057
        %1284 = vmatpush.msra.mxu0 %v1055
        %1285 = vmatpush.msra.mxu0 %v1053
        %1286 = vmatpush.msra.mxu0 %v1051
        %1287 = vmatpush.msra.mxu0 %v1049
        %1288 = vmatpush.msra.mxu0 %v1047
        %1289 = vmatmul.f32.gmra.mxu0 %v946
        %v1290 = vpop.f32.mrf.mxu0
        %v1291 = vadd.f32 %v1271, %v1290
        %1292 = vdwg.mxu0
        %1293 = vmatpush.msra.mxu0 %v1109
        %1294 = vmatpush.msra.mxu0 %v1107
        %1295 = vmatpush.msra.mxu0 %v1105
        %1296 = vmatpush.msra.mxu0 %v1103
        %1297 = vmatpush.msra.mxu0 %v1101
        %1298 = vmatpush.msra.mxu0 %v1099
        %1299 = vmatpush.msra.mxu0 %v1097
        %1300 = vmatpush.msra.mxu0 %v1095
        %1301 = vmatpush.msra.mxu0 %v1093
        %1302 = vmatpush.msra.mxu0 %v1091
        %1303 = vmatpush.msra.mxu0 %v1089
        %1304 = vmatpush.msra.mxu0 %v1087
        %1305 = vmatpush.msra.mxu0 %v1085
        %1306 = vmatpush.msra.mxu0 %v1083
        %1307 = vmatpush.msra.mxu0 %v1081
        %1308 = vmatpush.msra.mxu0 %v1079
        %1309 = vmatmul.f32.gmra.mxu0 %v947
        %v1310 = vpop.f32.mrf.mxu0
        %v1311 = vadd.f32 %v1291, %v1310
        %1312 = vdwg.mxu0
        %1313 = vmatpush.msra.mxu0 %v1141
        %1314 = vmatpush.msra.mxu0 %v1139
        %1315 = vmatpush.msra.mxu0 %v1137
        %1316 = vmatpush.msra.mxu0 %v1135
        %1317 = vmatpush.msra.mxu0 %v1133
        %1318 = vmatpush.msra.mxu0 %v1131
        %1319 = vmatpush.msra.mxu0 %v1129
        %1320 = vmatpush.msra.mxu0 %v1127
        %1321 = vmatpush.msra.mxu0 %v1125
        %1322 = vmatpush.msra.mxu0 %v1123
        %1323 = vmatpush.msra.mxu0 %v1121
        %1324 = vmatpush.msra.mxu0 %v1119
        %1325 = vmatpush.msra.mxu0 %v1117
        %1326 = vmatpush.msra.mxu0 %v1115
        %1327 = vmatpush.msra.mxu0 %v1113
        %1328 = vmatpush.msra.mxu0 %v1111
        %1329 = vmatmul.f32.gmra.mxu0 %v948
        %v1330 = vpop.f32.mrf.mxu0
        %v1331 = vadd.f32 %v1311, %v1330
        %1332 = vdwg.mxu0
        %1333 = vmatpush.msra.mxu0 %v1173
        %1334 = vmatpush.msra.mxu0 %v1171
        %1335 = vmatpush.msra.mxu0 %v1169
        %1336 = vmatpush.msra.mxu0 %v1167
        %1337 = vmatpush.msra.mxu0 %v1165
        %1338 = vmatpush.msra.mxu0 %v1163
        %1339 = vmatpush.msra.mxu0 %v1161
        %1340 = vmatpush.msra.mxu0 %v1159
        %1341 = vmatpush.msra.mxu0 %v1157
        %1342 = vmatpush.msra.mxu0 %v1155
        %1343 = vmatpush.msra.mxu0 %v1153
        %1344 = vmatpush.msra.mxu0 %v1151
        %1345 = vmatpush.msra.mxu0 %v1149
        %1346 = vmatpush.msra.mxu0 %v1147
        %1347 = vmatpush.msra.mxu0 %v1145
        %1348 = vmatpush.msra.mxu0 %v1143
        %1349 = vmatmul.f32.gmra.mxu0 %v949
        %v1350 = vpop.f32.mrf.mxu0
        %v1351 = vadd.f32 %v1331, %v1350
        %1352 = vdwg.mxu0
        %1353 = vmatpush.msra.mxu0 %v1205
        %1354 = vmatpush.msra.mxu0 %v1203
        %1355 = vmatpush.msra.mxu0 %v1201
        %1356 = vmatpush.msra.mxu0 %v1199
        %1357 = vmatpush.msra.mxu0 %v1197
        %1358 = vmatpush.msra.mxu0 %v1195
        %1359 = vmatpush.msra.mxu0 %v1193
        %1360 = vmatpush.msra.mxu0 %v1191
        %1361 = vmatpush.msra.mxu0 %v1189
        %1362 = vmatpush.msra.mxu0 %v1187
        %1363 = vmatpush.msra.mxu0 %v1185
        %1364 = vmatpush.msra.mxu0 %v1183
        %1365 = vmatpush.msra.mxu0 %v1181
        %1366 = vmatpush.msra.mxu0 %v1179
        %1367 = vmatpush.msra.mxu0 %v1177
        %1368 = vmatpush.msra.mxu0 %v1175
        %1369 = vmatmul.f32.gmra.mxu0 %v950
        %v1370 = vpop.f32.mrf.mxu0
        %v1371 = vadd.f32 %v1351, %v1370
        %1372 = vdwg.mxu0
        %1373 = vmatpush.msra.mxu0 %v982
        %1374 = vmatpush.msra.mxu0 %v980
        %1375 = vmatpush.msra.mxu0 %v978
        %1376 = vmatpush.msra.mxu0 %v976
        %1377 = vmatpush.msra.mxu0 %v974
        %1378 = vmatpush.msra.mxu0 %v972
        %1379 = vmatpush.msra.mxu0 %v970
        %1380 = vmatpush.msra.mxu0 %v968
        %1381 = vmatpush.msra.mxu0 %v966
        %1382 = vmatpush.msra.mxu0 %v964
        %1383 = vmatpush.msra.mxu0 %v962
        %1384 = vmatpush.msra.mxu0 %v960
        %1385 = vmatpush.msra.mxu0 %v958
        %1386 = vmatpush.msra.mxu0 %v956
        %1387 = vmatpush.msra.mxu0 %v954
        %1388 = vmatpush.msra.mxu0 %v952
        %1389 = vmatmul.f32.gmra.mxu0 %v943
        %v1390 = vpop.f32.mrf.mxu0
        %v1391 = vadd.f32 %v1210, %v1390
        %1392 = vdwg.mxu0
        %1393 = vmatpush.msra.mxu0 %v1014
        %1394 = vmatpush.msra.mxu0 %v1012
        %1395 = vmatpush.msra.mxu0 %v1010
        %1396 = vmatpush.msra.mxu0 %v1008
        %1397 = vmatpush.msra.mxu0 %v1006
        %1398 = vmatpush.msra.mxu0 %v1004
        %1399 = vmatpush.msra.mxu0 %v1002
        %1400 = vmatpush.msra.mxu0 %v1000
        %1401 = vmatpush.msra.mxu0 %v998
        %1402 = vmatpush.msra.mxu0 %v996
        %1403 = vmatpush.msra.mxu0 %v994
        %1404 = vmatpush.msra.mxu0 %v992
        %1405 = vmatpush.msra.mxu0 %v990
        %1406 = vmatpush.msra.mxu0 %v988
        %1407 = vmatpush.msra.mxu0 %v986
        %1408 = vmatpush.msra.mxu0 %v984
        %1409 = vmatmul.f32.gmra.mxu0 %v944
        %v1410 = vpop.f32.mrf.mxu0
        %v1411 = vadd.f32 %v1391, %v1410
        %1412 = vdwg.mxu0
        %1413 = vmatpush.msra.mxu0 %v1046
        %1414 = vmatpush.msra.mxu0 %v1044
        %1415 = vmatpush.msra.mxu0 %v1042
        %1416 = vmatpush.msra.mxu0 %v1040
        %1417 = vmatpush.msra.mxu0 %v1038
        %1418 = vmatpush.msra.mxu0 %v1036
        %1419 = vmatpush.msra.mxu0 %v1034
        %1420 = vmatpush.msra.mxu0 %v1032
        %1421 = vmatpush.msra.mxu0 %v1030
        %1422 = vmatpush.msra.mxu0 %v1028
        %1423 = vmatpush.msra.mxu0 %v1026
        %1424 = vmatpush.msra.mxu0 %v1024
        %1425 = vmatpush.msra.mxu0 %v1022
        %1426 = vmatpush.msra.mxu0 %v1020
        %1427 = vmatpush.msra.mxu0 %v1018
        %1428 = vmatpush.msra.mxu0 %v1016
        %1429 = vmatmul.f32.gmra.mxu0 %v945
        %v1430 = vpop.f32.mrf.mxu0
        %v1431 = vadd.f32 %v1411, %v1430
        %1432 = vdwg.mxu0
        %1433 = vmatpush.msra.mxu0 %v1078
        %1434 = vmatpush.msra.mxu0 %v1076
        %1435 = vmatpush.msra.mxu0 %v1074
        %1436 = vmatpush.msra.mxu0 %v1072
        %1437 = vmatpush.msra.mxu0 %v1070
        %1438 = vmatpush.msra.mxu0 %v1068
        %1439 = vmatpush.msra.mxu0 %v1066
        %1440 = vmatpush.msra.mxu0 %v1064
        %1441 = vmatpush.msra.mxu0 %v1062
        %1442 = vmatpush.msra.mxu0 %v1060
        %1443 = vmatpush.msra.mxu0 %v1058
        %1444 = vmatpush.msra.mxu0 %v1056
        %1445 = vmatpush.msra.mxu0 %v1054
        %1446 = vmatpush.msra.mxu0 %v1052
        %1447 = vmatpush.msra.mxu0 %v1050
        %1448 = vmatpush.msra.mxu0 %v1048
        %1449 = vmatmul.f32.gmra.mxu0 %v946
        %v1450 = vpop.f32.mrf.mxu0
        %v1451 = vadd.f32 %v1431, %v1450
        %1452 = vdwg.mxu0
        %1453 = vmatpush.msra.mxu0 %v1110
        %1454 = vmatpush.msra.mxu0 %v1108
        %1455 = vmatpush.msra.mxu0 %v1106
        %1456 = vmatpush.msra.mxu0 %v1104
        %1457 = vmatpush.msra.mxu0 %v1102
        %1458 = vmatpush.msra.mxu0 %v1100
        %1459 = vmatpush.msra.mxu0 %v1098
        %1460 = vmatpush.msra.mxu0 %v1096
        %1461 = vmatpush.msra.mxu0 %v1094
        %1462 = vmatpush.msra.mxu0 %v1092
        %1463 = vmatpush.msra.mxu0 %v1090
        %1464 = vmatpush.msra.mxu0 %v1088
        %1465 = vmatpush.msra.mxu0 %v1086
        %1466 = vmatpush.msra.mxu0 %v1084
        %1467 = vmatpush.msra.mxu0 %v1082
        %1468 = vmatpush.msra.mxu0 %v1080
        %1469 = vmatmul.f32.gmra.mxu0 %v947
        %v1470 = vpop.f32.mrf.mxu0
        %v1471 = vadd.f32 %v1451, %v1470
        %1472 = vdwg.mxu0
        %1473 = vmatpush.msra.mxu0 %v1142
        %1474 = vmatpush.msra.mxu0 %v1140
        %1475 = vmatpush.msra.mxu0 %v1138
        %1476 = vmatpush.msra.mxu0 %v1136
        %1477 = vmatpush.msra.mxu0 %v1134
        %1478 = vmatpush.msra.mxu0 %v1132
        %1479 = vmatpush.msra.mxu0 %v1130
        %1480 = vmatpush.msra.mxu0 %v1128
        %1481 = vmatpush.msra.mxu0 %v1126
        %1482 = vmatpush.msra.mxu0 %v1124
        %1483 = vmatpush.msra.mxu0 %v1122
        %1484 = vmatpush.msra.mxu0 %v1120
        %1485 = vmatpush.msra.mxu0 %v1118
        %1486 = vmatpush.msra.mxu0 %v1116
        %1487 = vmatpush.msra.mxu0 %v1114
        %1488 = vmatpush.msra.mxu0 %v1112
        %1489 = vmatmul.f32.gmra.mxu0 %v948
        %v1490 = vpop.f32.mrf.mxu0
        %v1491 = vadd.f32 %v1471, %v1490
        %1492 = vdwg.mxu0
        %1493 = vmatpush.msra.mxu0 %v1174
        %1494 = vmatpush.msra.mxu0 %v1172
        %1495 = vmatpush.msra.mxu0 %v1170
        %1496 = vmatpush.msra.mxu0 %v1168
        %1497 = vmatpush.msra.mxu0 %v1166
        %1498 = vmatpush.msra.mxu0 %v1164
        %1499 = vmatpush.msra.mxu0 %v1162
        %1500 = vmatpush.msra.mxu0 %v1160
        %1501 = vmatpush.msra.mxu0 %v1158
        %1502 = vmatpush.msra.mxu0 %v1156
        %1503 = vmatpush.msra.mxu0 %v1154
        %1504 = vmatpush.msra.mxu0 %v1152
        %1505 = vmatpush.msra.mxu0 %v1150
        %1506 = vmatpush.msra.mxu0 %v1148
        %1507 = vmatpush.msra.mxu0 %v1146
        %1508 = vmatpush.msra.mxu0 %v1144
        %1509 = vmatmul.f32.gmra.mxu0 %v949
        %v1510 = vpop.f32.mrf.mxu0
        %v1511 = vadd.f32 %v1491, %v1510
        %1512 = vdwg.mxu0
        %1513 = vmatpush.msra.mxu0 %v1206
        %1514 = vmatpush.msra.mxu0 %v1204
        %1515 = vmatpush.msra.mxu0 %v1202
        %1516 = vmatpush.msra.mxu0 %v1200
        %1517 = vmatpush.msra.mxu0 %v1198
        %1518 = vmatpush.msra.mxu0 %v1196
        %1519 = vmatpush.msra.mxu0 %v1194
        %1520 = vmatpush.msra.mxu0 %v1192
        %1521 = vmatpush.msra.mxu0 %v1190
        %1522 = vmatpush.msra.mxu0 %v1188
        %1523 = vmatpush.msra.mxu0 %v1186
        %1524 = vmatpush.msra.mxu0 %v1184
        %1525 = vmatpush.msra.mxu0 %v1182
        %1526 = vmatpush.msra.mxu0 %v1180
        %1527 = vmatpush.msra.mxu0 %v1178
        %1528 = vmatpush.msra.mxu0 %v1176
        %1529 = vmatmul.f32.gmra.mxu0 %v950
        %v1530 = vpop.f32.mrf.mxu0
        %v1531 = vadd.f32 %v1511, %v1530
        %1532 = vdwg.mxu0
        %v1533 = vmax.f32 %v1371, 0.0
        %v1534 = vmax.f32 %v1531, 0.0
        %v1535 = vld [vmem:[%s5] sm:$0x3]
        %v1537 = vperm.slane %v1535, 0
        %v1538 = vperm.slane %v1535, 1
        %v1541 = vmul.f32 %v1533, %v1537
        %v1542 = vmul.f32 %v1534, %v1538
        %v1543 = vadd.f32 %v1541, %v1542
        %1544 = vadd.xlane.f32.xlu0 %v1543
        %v1545 = vpop.xlane.xlu0 %1544
        %v1546 = vld [vmem:[#allocation2] sm:$0x1]
        %v1548 = vperm.slane %v1546, 0
        %v1550 = vadd.f32 %v1545, %v1548
        %v1551 = vxor.u32 %v1550, 2147483648
        %v1552 = vmul.f32 %v1551, 1.442695
        %v1553 = vpow.pop %v1552
        %v1554 = vadd.f32 %v1553, 1.0
        %v1555 = vrcp.pop %v1554
        %v1556 = vmul.f32 %v1554, %v1555
        %v1557 = vsub.f32 1.0, %v1556
        %v1558 = vmul.f32 %v1555, %v1557
        %v1559 = vadd.f32 %v1555, %v1558
        %vm1560 = vweird.f32 %v1554
        %vm1561 = vweird.f32 %v1555
        %vm1562 = vmor %vm1560, %vm1561
        %v1563 = vsel %vm1562, %v1555, %v1559
        %v1564 = vand.u32 2147483647, %v1554
        %vm1565 = vcmp.eq.f32.partialorder %v1564, 8.507059e+37
        %v1566 = vand.u32 %v1554, 2147483648
        %v1567 = vor.u32 1.1754944e-38, %v1566
        %v1568 = vsel %vm1565, %v1567, %v1563
        %v1569 = vmul.f32 1.0, %v1568
        %v1570 = vmax.f32 %v1569, 9e-06
        %vm1571 = vcmask 7168
        %1572 = vst.msk [vmem:[%s346] sm:$0xff] %vm1571, %v1570
        %p1573 = scmp.lt.s32.totalorder %s25, 1
        %s1574 = scalar_select %p1573, %s25, 1
        %s1575 = smul.addr %s1574, 8
        %s1576 = scalar_lea.vmem %s7, %s1575
        // Predicated region
        $region65: #{tpu_custom_call.1} parent=47 // pred_check
          %p1577 = pneg %p195
        $region66: #{tpu_custom_call.1} parent=47 // pred_check_branch
          %1579 = sbr.rel (%p1577) target = $region68
        $region67: #{tpu_custom_call.1} parent=47 // pred_region
          _
        $region68: #{tpu_custom_call.1} parent=47 // pred_fallthru
          _
      $region48: #{tpu_custom_call.1} parent=5 // pred_fallthru
        _
      %p1580 = scmp.le.s32.totalorder 2, %s20
      // Predicated region
      $region69: #{tpu_custom_call.1} parent=5 // pred_check
        %p1581 = pneg %p1580
      $region70: #{tpu_custom_call.1} parent=5 // pred_check_branch
        %1583 = sbr.rel (%p1581) target = $region72
      $region71: #{tpu_custom_call.1} parent=5 // pred_region
        %s1584 = ssub.s32 %s20, 2
        // Predicated region
        $region73: #{tpu_custom_call.1} parent=71 // pred_check
          %p1585 = pneg %p201
        $region74: #{tpu_custom_call.1} parent=71 // pred_check_branch
          %1587 = sbr.rel (%p1585) target = $region76
        $region75: #{tpu_custom_call.1} parent=71 // pred_region
          %p1588 = scmp.lt.s32.totalorder %s26, 1
          %s1589 = scalar_select %p1588, %s26, 1
          %s1590 = smul.addr %s1589, 8
          %s1591 = scalar_lea.vmem %s7, %s1590
        $region76: #{tpu_custom_call.1} parent=71 // pred_fallthru
          _
      $region72: #{tpu_custom_call.1} parent=5 // pred_fallthru
        _
    $region6: #{tpu_custom_call.1} parent=1 // loop_footer
      %s24 = sadd.s32 1, %s20
    $region7: #{tpu_custom_call.1} parent=1 // loop_footer_branch
      %19 = sbr.rel target = $region3
    $region8: #{tpu_custom_call.1} parent=1 // loop_exit
      _
    %1592 = vsyncpa [#allocation4], 1
    %s1593 = scalar_lea.sflag [#allocation4], 1
    %1594 = vsyncpa %s1593, 1
    %1595 = vsyncpa [#allocation6], 1
    %1596 = vsyncpa [#allocation9], 1

</llo_original>
